<compile_context>
chip_gen: v7x
topology: tpu7x:2x2x1
jax: 0.10.0
libtpu: 0.0.40
codegen_flags: <defaults>
</compile_context>

<pallas_src>
import jax
import jax.numpy as jnp
from jax.experimental import pallas as pl
from jax.experimental.pallas import tpu as pltpu

INPUT_SIZE = 2
OUTPUT_SIZE = 4
HIDDEN = (392, 392, 392, 392)
OUT_PAD = 128  # lane-dense padded output width

# NOTE: HIDDEN=392 pads to 512 lanes (~1.7x extra MXU passes). Retraining at
# 384 or 512 would recover that; we do NOT add explicit zero-padding here --
# the compiler already handles it.


def _round_up(x, m):
    return ((x + m - 1) // m) * m


def _mlp_kernel(x_ref,
                w0_ref, b0_ref,
                w1_ref, b1_ref,
                w2_ref, b2_ref,
                w3_ref, b3_ref,
                w4_ref, b4_ref,
                o_ref):
    """Fused MLP forward for one (tile_b, 2) batch tile."""
    x = x_ref[...]  # (tile_b, 2) f32

    # Layer 0 on the VPU: h = x0 * W0[0, :] + x1 * W0[1, :] + b0 (K=2 would
    # waste the MXU's contraction depth and add a serialized result-FIFO
    # drain). Two broadcast FMAs co-issue under the MXU-bound layers below.
    h = (x[:, 0:1] * w0_ref[0:1, :]
         + x[:, 1:2] * w0_ref[1:2, :]
         + b0_ref[...])
    h = jnp.maximum(h, 0.0)

    # Hidden layers 1..3 on the MXU: bf16 operands, f32 accumulation; bias-add
    # and ReLU in f32 on the VPU.
    for w_ref, b_ref in ((w1_ref, b1_ref), (w2_ref, b2_ref), (w3_ref, b3_ref)):
        h = jnp.dot(h.astype(jnp.bfloat16), w_ref[...],
                    preferred_element_type=jnp.float32) + b_ref[...]
        h = jnp.maximum(h, 0.0)

    # Output layer (padded to 128 lanes for an unmasked, lane-dense store).
    out = jnp.dot(h.astype(jnp.bfloat16), w4_ref[...],
                  preferred_element_type=jnp.float32) + b4_ref[...]
    o_ref[...] = out.astype(o_ref.dtype)


def neural_force_manifold_forward(state, params, *, tile_b=None):
    """state: (B, 2) float32; params: list of (W, b) with W as [in, out] f32."""
    B = state.shape[0]
    if tile_b is None:
        # Multiple of 8 (sublane); cap at 256 so M fills the MXU on v6e/v7x
        # while two live f32 activation slabs stay small in VMEM.
        tile_b = min(256, _round_up(B, 8))
    b_pad = _round_up(B, tile_b)
    if b_pad != B:
        state = jnp.pad(state, ((0, b_pad - B), (0, 0)))

    (w0, b0), (w1, b1), (w2, b2), (w3, b3), (w4, b4) = params

    # One-time dtype/layout prep (plain JAX glue, traced/fused by XLA):
    #  * hidden weights -> bf16 for the MXU path (f32 accumulation in-kernel)
    #  * layer-0 weight stays f32 (VPU path)
    #  * final layer padded to a lane-dense 128-wide output
    w1b = w1.astype(jnp.bfloat16)
    w2b = w2.astype(jnp.bfloat16)
    w3b = w3.astype(jnp.bfloat16)
    w4p = jnp.zeros((HIDDEN[-1], OUT_PAD), jnp.bfloat16)
    w4p = w4p.at[:, :OUTPUT_SIZE].set(w4.astype(jnp.bfloat16))
    b4p = jnp.zeros((1, OUT_PAD), jnp.float32).at[:, :OUTPUT_SIZE].set(b4)

    flat_args = [state, w0, b0, w1b, b1, w2b, b2, w3b, b3, w4p, b4p]

    def const_spec(a):
        # Full-extent block, constant index -> fetched once, VMEM-resident.
        return pl.BlockSpec(a.shape, lambda i: (0, 0))

    in_specs = ([pl.BlockSpec((tile_b, INPUT_SIZE), lambda i: (i, 0))]
                + [const_spec(a) for a in flat_args[1:]])
    out_spec = pl.BlockSpec((tile_b, OUT_PAD), lambda i: (i, 0))

    sizes = (INPUT_SIZE,) + HIDDEN + (OUTPUT_SIZE,)
    flops = 2 * b_pad * sum(sizes[i] * sizes[i + 1] for i in range(len(sizes) - 1))
    bytes_accessed = (sum(int(a.size) * a.dtype.itemsize for a in flat_args[1:])
                      + b_pad * (INPUT_SIZE + OUT_PAD) * 4)
    cost = pl.CostEstimate(flops=flops, transcendentals=0,
                           bytes_accessed=bytes_accessed)

    out_padded = pl.pallas_call(
        _mlp_kernel,
        grid=(b_pad // tile_b,),
        out_shape=jax.ShapeDtypeStruct((b_pad, OUT_PAD), jnp.float32),
        in_specs=in_specs,
        out_specs=out_spec,
        compiler_params=pltpu.CompilerParams(
            dimension_semantics=("parallel",)),
        cost_estimate=cost,
    )(*flat_args)

    return out_padded[:B, :OUTPUT_SIZE]


def init_params(key):
    """Deterministic PyTorch-style init: U(-1/sqrt(fan_in), 1/sqrt(fan_in)).

    nn.Linear stores weight as [out, in]; initialize in that convention and
    transpose to [in, out] for the kernel layout. (The real module loads a
    .pth checkpoint; here we synthesize weights deterministically.)
    """
    sizes = (INPUT_SIZE,) + HIDDEN + (OUTPUT_SIZE,)
    params = []
    for i in range(len(sizes) - 1):
        fan_in, fan_out = sizes[i], sizes[i + 1]
        key, kw, kb = jax.random.split(key, 3)
        bound = 1.0 / (fan_in ** 0.5)
        w_torch = jax.random.uniform(kw, (fan_out, fan_in), jnp.float32,
                                     minval=-bound, maxval=bound)
        b = jax.random.uniform(kb, (1, fan_out), jnp.float32,
                               minval=-bound, maxval=bound)
        params.append((w_torch.T, b))  # [in, out] layout for the kernel
    return params


def reference_forward(state, params):
    """Pure-JAX (f32) reference of the PyTorch forward, for validation."""
    h = state
    for (w, b) in params[:-1]:
        h = jnp.maximum(h @ w + b, 0.0)
    w, b = params[-1]
    return h @ w + b


if __name__ == "__main__":
    key = jax.random.PRNGKey(0)
    key, kx = jax.random.split(key)

    B = 8  # small demo batch (ragged vs. tile size is handled by padding)
    state = jax.random.normal(kx, (B, INPUT_SIZE), jnp.float32)
    params = init_params(key)

    out = neural_force_manifold_forward(state, params)
    out = jax.block_until_ready(out)

    ref = reference_forward(state, params)
    assert out.shape == (B, OUTPUT_SIZE), out.shape
    # bf16 MXU operands (f32 accumulation) vs the f32 reference -> relaxed tol.
    max_err = float(jnp.max(jnp.abs(out - ref)))
    assert jnp.allclose(out, ref, atol=5e-2, rtol=5e-2), max_err

    print("KERNEL_OK")
</pallas_src>

<mosaic_0001>
module attributes {stable_mosaic.version = 11 : i64} {
  func.func @_mlp_kernel(%arg0: i32, %arg1: memref<8x2xf32, #tpu.memory_space<vmem>>, %arg2: memref<2x392xf32, #tpu.memory_space<vmem>>, %arg3: memref<1x392xf32, #tpu.memory_space<vmem>>, %arg4: memref<392x392xbf16, #tpu.memory_space<vmem>>, %arg5: memref<1x392xf32, #tpu.memory_space<vmem>>, %arg6: memref<392x392xbf16, #tpu.memory_space<vmem>>, %arg7: memref<1x392xf32, #tpu.memory_space<vmem>>, %arg8: memref<392x392xbf16, #tpu.memory_space<vmem>>, %arg9: memref<1x392xf32, #tpu.memory_space<vmem>>, %arg10: memref<392x128xbf16, #tpu.memory_space<vmem>>, %arg11: memref<1x128xf32, #tpu.memory_space<vmem>>, %arg12: memref<8x128xf32, #tpu.memory_space<vmem>>) attributes {dimension_semantics = [#tpu.dimension_semantics<parallel>], iteration_bounds = array<i64: 1>, scalar_prefetch = 0 : i64, scratch_operands = 0 : i64, tpu.core_type = #tpu.core_type<tc>, window_params = [{transform_indices = @transform_0, window_bounds = array<i64: 8, 2>}, {pipeline_mode = #tpu.pipeline_mode<synchronous>, transform_indices = @transform_1, window_bounds = array<i64: 2, 392>}, {pipeline_mode = #tpu.pipeline_mode<synchronous>, transform_indices = @transform_2, window_bounds = array<i64: 1, 392>}, {pipeline_mode = #tpu.pipeline_mode<synchronous>, transform_indices = @transform_3, window_bounds = array<i64: 392, 392>}, {pipeline_mode = #tpu.pipeline_mode<synchronous>, transform_indices = @transform_4, window_bounds = array<i64: 1, 392>}, {pipeline_mode = #tpu.pipeline_mode<synchronous>, transform_indices = @transform_5, window_bounds = array<i64: 392, 392>}, {pipeline_mode = #tpu.pipeline_mode<synchronous>, transform_indices = @transform_6, window_bounds = array<i64: 1, 392>}, {pipeline_mode = #tpu.pipeline_mode<synchronous>, transform_indices = @transform_7, window_bounds = array<i64: 392, 392>}, {pipeline_mode = #tpu.pipeline_mode<synchronous>, transform_indices = @transform_8, window_bounds = array<i64: 1, 392>}, {pipeline_mode = #tpu.pipeline_mode<synchronous>, transform_indices = @transform_9, window_bounds = array<i64: 392, 128>}, {pipeline_mode = #tpu.pipeline_mode<synchronous>, transform_indices = @transform_10, window_bounds = array<i64: 1, 128>}, {transform_indices = @transform_11, window_bounds = array<i64: 8, 128>}]} {
    %c0 = arith.constant 0 : index
    %c0_0 = arith.constant 0 : index
    %0 = vector.load %arg1[%c0, %c0_0] : memref<8x2xf32, #tpu.memory_space<vmem>>, vector<8x2xf32>
    %1 = vector.extract_strided_slice %0 {offsets = [0, 0], sizes = [8, 1], strides = [1, 1]} : vector<8x2xf32> to vector<8x1xf32>
    %c0_1 = arith.constant 0 : index
    %c0_2 = arith.constant 0 : index
    %2 = vector.load %arg2[%c0_1, %c0_2] : memref<2x392xf32, #tpu.memory_space<vmem>>, vector<1x392xf32>
    %3 = vector.broadcast %1 : vector<8x1xf32> to vector<8x392xf32>
    %4 = vector.broadcast %2 : vector<1x392xf32> to vector<8x392xf32>
    %5 = arith.mulf %3, %4 : vector<8x392xf32>
    %6 = vector.extract_strided_slice %0 {offsets = [0, 1], sizes = [8, 1], strides = [1, 1]} : vector<8x2xf32> to vector<8x1xf32>
    %c1 = arith.constant 1 : index
    %c0_3 = arith.constant 0 : index
    %7 = vector.load %arg2[%c1, %c0_3] : memref<2x392xf32, #tpu.memory_space<vmem>>, vector<1x392xf32>
    %8 = vector.broadcast %6 : vector<8x1xf32> to vector<8x392xf32>
    %9 = vector.broadcast %7 : vector<1x392xf32> to vector<8x392xf32>
    %10 = arith.mulf %8, %9 : vector<8x392xf32>
    %11 = arith.addf %5, %10 : vector<8x392xf32>
    %c0_4 = arith.constant 0 : index
    %c0_5 = arith.constant 0 : index
    %12 = vector.load %arg3[%c0_4, %c0_5] : memref<1x392xf32, #tpu.memory_space<vmem>>, vector<1x392xf32>
    %13 = vector.broadcast %12 : vector<1x392xf32> to vector<8x392xf32>
    %14 = arith.addf %11, %13 : vector<8x392xf32>
    %cst = arith.constant 0.000000e+00 : f32
    %15 = vector.broadcast %cst : f32 to vector<8x392xf32>
    %16 = arith.maximumf %14, %15 : vector<8x392xf32>
    %17 = arith.truncf %16 : vector<8x392xf32> to vector<8x392xbf16>
    %c0_6 = arith.constant 0 : index
    %c0_7 = arith.constant 0 : index
    %18 = vector.load %arg4[%c0_6, %c0_7] : memref<392x392xbf16, #tpu.memory_space<vmem>>, vector<392x392xbf16>
    %cst_8 = arith.constant dense<0.000000e+00> : vector<8x392xf32>
    %19 = tpu.matmul %17, %18, %cst_8 {dimension_numbers = #tpu.dot_dimension_numbers<[1], [0], [0], [1], [0, 0, 1, 1], [], []>} : vector<8x392xbf16>, vector<392x392xbf16>, vector<8x392xf32> -> vector<8x392xf32>
    %c0_9 = arith.constant 0 : index
    %c0_10 = arith.constant 0 : index
    %20 = vector.load %arg5[%c0_9, %c0_10] : memref<1x392xf32, #tpu.memory_space<vmem>>, vector<1x392xf32>
    %21 = vector.broadcast %20 : vector<1x392xf32> to vector<8x392xf32>
    %22 = arith.addf %19, %21 : vector<8x392xf32>
    %cst_11 = arith.constant 0.000000e+00 : f32
    %23 = vector.broadcast %cst_11 : f32 to vector<8x392xf32>
    %24 = arith.maximumf %22, %23 : vector<8x392xf32>
    %25 = arith.truncf %24 : vector<8x392xf32> to vector<8x392xbf16>
    %c0_12 = arith.constant 0 : index
    %c0_13 = arith.constant 0 : index
    %26 = vector.load %arg6[%c0_12, %c0_13] : memref<392x392xbf16, #tpu.memory_space<vmem>>, vector<392x392xbf16>
    %cst_14 = arith.constant dense<0.000000e+00> : vector<8x392xf32>
    %27 = tpu.matmul %25, %26, %cst_14 {dimension_numbers = #tpu.dot_dimension_numbers<[1], [0], [0], [1], [0, 0, 1, 1], [], []>} : vector<8x392xbf16>, vector<392x392xbf16>, vector<8x392xf32> -> vector<8x392xf32>
    %c0_15 = arith.constant 0 : index
    %c0_16 = arith.constant 0 : index
    %28 = vector.load %arg7[%c0_15, %c0_16] : memref<1x392xf32, #tpu.memory_space<vmem>>, vector<1x392xf32>
    %29 = vector.broadcast %28 : vector<1x392xf32> to vector<8x392xf32>
    %30 = arith.addf %27, %29 : vector<8x392xf32>
    %cst_17 = arith.constant 0.000000e+00 : f32
    %31 = vector.broadcast %cst_17 : f32 to vector<8x392xf32>
    %32 = arith.maximumf %30, %31 : vector<8x392xf32>
    %33 = arith.truncf %32 : vector<8x392xf32> to vector<8x392xbf16>
    %c0_18 = arith.constant 0 : index
    %c0_19 = arith.constant 0 : index
    %34 = vector.load %arg8[%c0_18, %c0_19] : memref<392x392xbf16, #tpu.memory_space<vmem>>, vector<392x392xbf16>
    %cst_20 = arith.constant dense<0.000000e+00> : vector<8x392xf32>
    %35 = tpu.matmul %33, %34, %cst_20 {dimension_numbers = #tpu.dot_dimension_numbers<[1], [0], [0], [1], [0, 0, 1, 1], [], []>} : vector<8x392xbf16>, vector<392x392xbf16>, vector<8x392xf32> -> vector<8x392xf32>
    %c0_21 = arith.constant 0 : index
    %c0_22 = arith.constant 0 : index
    %36 = vector.load %arg9[%c0_21, %c0_22] : memref<1x392xf32, #tpu.memory_space<vmem>>, vector<1x392xf32>
    %37 = vector.broadcast %36 : vector<1x392xf32> to vector<8x392xf32>
    %38 = arith.addf %35, %37 : vector<8x392xf32>
    %cst_23 = arith.constant 0.000000e+00 : f32
    %39 = vector.broadcast %cst_23 : f32 to vector<8x392xf32>
    %40 = arith.maximumf %38, %39 : vector<8x392xf32>
    %41 = arith.truncf %40 : vector<8x392xf32> to vector<8x392xbf16>
    %c0_24 = arith.constant 0 : index
    %c0_25 = arith.constant 0 : index
    %42 = vector.load %arg10[%c0_24, %c0_25] : memref<392x128xbf16, #tpu.memory_space<vmem>>, vector<392x128xbf16>
    %cst_26 = arith.constant dense<0.000000e+00> : vector<8x128xf32>
    %43 = tpu.matmul %41, %42, %cst_26 {dimension_numbers = #tpu.dot_dimension_numbers<[1], [0], [0], [1], [0, 0, 1, 1], [], []>} : vector<8x392xbf16>, vector<392x128xbf16>, vector<8x128xf32> -> vector<8x128xf32>
    %c0_27 = arith.constant 0 : index
    %c0_28 = arith.constant 0 : index
    %44 = vector.load %arg11[%c0_27, %c0_28] : memref<1x128xf32, #tpu.memory_space<vmem>>, vector<1x128xf32>
    %45 = vector.broadcast %44 : vector<1x128xf32> to vector<8x128xf32>
    %46 = arith.addf %43, %45 : vector<8x128xf32>
    %c0_29 = arith.constant 0 : index
    %c0_30 = arith.constant 0 : index
    %47 = vector.load %arg12[%c0_29, %c0_30] : memref<8x128xf32, #tpu.memory_space<vmem>>, vector<8x128xf32>
    tpu.vector_store %arg12[%c0_29, %c0_30], %46 {strides = array<i32>} : memref<8x128xf32, #tpu.memory_space<vmem>>, vector<8x128xf32>,
    return
  }
  func.func @transform_0(%arg0: i32) -> (i32, i32) {
    %c0_i32 = arith.constant 0 : i32
    %c0_i32_0 = arith.constant 0 : i32
    return %arg0, %c0_i32 : i32, i32
  }
  func.func @transform_1(%arg0: i32) -> (i32, i32) {
    %c0_i32 = arith.constant 0 : i32
    %c0_i32_0 = arith.constant 0 : i32
    %c0_i32_1 = arith.constant 0 : i32
    return %c0_i32, %c0_i32_0 : i32, i32
  }
  func.func @transform_2(%arg0: i32) -> (i32, i32) {
    %c0_i32 = arith.constant 0 : i32
    %c0_i32_0 = arith.constant 0 : i32
    %c0_i32_1 = arith.constant 0 : i32
    return %c0_i32, %c0_i32_0 : i32, i32
  }
  func.func @transform_3(%arg0: i32) -> (i32, i32) {
    %c0_i32 = arith.constant 0 : i32
    %c0_i32_0 = arith.constant 0 : i32
    %c0_i32_1 = arith.constant 0 : i32
    return %c0_i32, %c0_i32_0 : i32, i32
  }
  func.func @transform_4(%arg0: i32) -> (i32, i32) {
    %c0_i32 = arith.constant 0 : i32
    %c0_i32_0 = arith.constant 0 : i32
    %c0_i32_1 = arith.constant 0 : i32
    return %c0_i32, %c0_i32_0 : i32, i32
  }
  func.func @transform_5(%arg0: i32) -> (i32, i32) {
    %c0_i32 = arith.constant 0 : i32
    %c0_i32_0 = arith.constant 0 : i32
    %c0_i32_1 = arith.constant 0 : i32
    return %c0_i32, %c0_i32_0 : i32, i32
  }
  func.func @transform_6(%arg0: i32) -> (i32, i32) {
    %c0_i32 = arith.constant 0 : i32
    %c0_i32_0 = arith.constant 0 : i32
    %c0_i32_1 = arith.constant 0 : i32
    return %c0_i32, %c0_i32_0 : i32, i32
  }
  func.func @transform_7(%arg0: i32) -> (i32, i32) {
    %c0_i32 = arith.constant 0 : i32
    %c0_i32_0 = arith.constant 0 : i32
    %c0_i32_1 = arith.constant 0 : i32
    return %c0_i32, %c0_i32_0 : i32, i32
  }
  func.func @transform_8(%arg0: i32) -> (i32, i32) {
    %c0_i32 = arith.constant 0 : i32
    %c0_i32_0 = arith.constant 0 : i32
    %c0_i32_1 = arith.constant 0 : i32
    return %c0_i32, %c0_i32_0 : i32, i32
  }
  func.func @transform_9(%arg0: i32) -> (i32, i32) {
    %c0_i32 = arith.constant 0 : i32
    %c0_i32_0 = arith.constant 0 : i32
    %c0_i32_1 = arith.constant 0 : i32
    return %c0_i32, %c0_i32_0 : i32, i32
  }
  func.func @transform_10(%arg0: i32) -> (i32, i32) {
    %c0_i32 = arith.constant 0 : i32
    %c0_i32_0 = arith.constant 0 : i32
    %c0_i32_1 = arith.constant 0 : i32
    return %c0_i32, %c0_i32_0 : i32, i32
  }
  func.func @transform_11(%arg0: i32) -> (i32, i32) {
    %c0_i32 = arith.constant 0 : i32
    %c0_i32_0 = arith.constant 0 : i32
    return %arg0, %c0_i32 : i32, i32
  }
}

</mosaic_0001>

<llo_original>
// kernel: tpu_custom_call.1
$region0: #{tpu_custom_call.1}
  #allocation0 [shape = 'u32[]', space=smem, size = 0x4, offset = 0x4, fixed_abs, tag = 'smem constant byte address 0x4 - core index']
  #allocation1 [shape = 'u32[144,128]{1,0:T(1,128)}', space=vmem, size = 0x12000, scoped, tag = 'internal scratch']
  %s0 = inlined_call_operand.vmem [shape: f32[8,2], index: 0, kind: input, shape index: {}]
  %s1 = inlined_call_operand.vmem [shape: f32[2,392], index: 1, kind: input, shape index: {}]
  %s2 = inlined_call_operand.vmem [shape: f32[1,392], index: 2, kind: input, shape index: {}]
  %s3 = inlined_call_operand.hbm [shape: bf16[392,392], index: 3, kind: input, shape index: {}]
  %s4 = inlined_call_operand.vmem [shape: f32[1,392], index: 4, kind: input, shape index: {}]
  %s5 = inlined_call_operand.hbm [shape: bf16[392,392], index: 5, kind: input, shape index: {}]
  %s6 = inlined_call_operand.vmem [shape: f32[1,392], index: 6, kind: input, shape index: {}]
  %s7 = inlined_call_operand.hbm [shape: bf16[392,392], index: 7, kind: input, shape index: {}]
  %s8 = inlined_call_operand.vmem [shape: f32[1,392], index: 8, kind: input, shape index: {}]
  %s9 = inlined_call_operand.hbm [shape: bf16[392,128], index: 9, kind: input, shape index: {}]
  %s10 = inlined_call_operand.vmem [shape: f32[1,128], index: 10, kind: input, shape index: {}]
  %s11 = inlined_call_operand.hbm [shape: f32[8,128], index: 11, kind: output, shape index: {}]
  %s12 = sld [smem:[#allocation0]]
  $region70: #{tpu_custom_call.1} parent=0
    _
  %s14 = ssub.s32 1, %s12
  %s15 = scalar_select 0, %s14, %s12
  $region1: #{tpu_custom_call.1} parent=0
    #allocation2 [shape = 'u8[401408]{0}', space=vmem, size = 0x62000, scoped, tag = 'input window, operand 3, single buffered']
    #allocation3 [shape = 's32[1]{0}', space=sflag, size = 0x4, scoped, tag = 'scoped memory for tpu_custom_call.1']
    #allocation4 [shape = 's32[1]{0}', space=sflag, size = 0x4, scoped, tag = 'scoped memory for tpu_custom_call.1']
    #allocation5 [shape = 'u8[401408]{0}', space=vmem, size = 0x62000, scoped, tag = 'input window, operand 5, single buffered']
    #allocation6 [shape = 's32[1]{0}', space=sflag, size = 0x4, scoped, tag = 'scoped memory for tpu_custom_call.1']
    #allocation7 [shape = 'u8[401408]{0}', space=vmem, size = 0x62000, scoped, tag = 'input window, operand 7, single buffered']
    #allocation8 [shape = 'u8[100352]{0}', space=vmem, size = 0x18800, scoped, tag = 'input window, operand 9, single buffered']
    #allocation9 [shape = 's32[1]{0}', space=sflag, size = 0x4, scoped, tag = 'scoped memory for tpu_custom_call.1']
    #allocation10 [shape = 'u8[4096]{0}', space=vmem, size = 0x1000, scoped, tag = 'output window, operand 0, single buffered']
    %16 = vsyncpa [#allocation3], 0
    %17 = vsyncpa [#allocation6], 0
    %18 = vsyncpa [#allocation9], 0
    %19 = vsyncpa [#allocation4], 0
    // Predicated region
    $region2: #{tpu_custom_call.1} parent=1 // pred_check
      _
    $region3: #{tpu_custom_call.1} parent=1 // pred_check_branch
      %21 = sbr.rel (0) target = $region5
    $region4: #{tpu_custom_call.1} parent=1 // pred_region
      _
    $region5: #{tpu_custom_call.1} parent=1 // pred_fallthru
      _
    // Predicated region
    $region6: #{tpu_custom_call.1} parent=1 // pred_check
      _
    $region7: #{tpu_custom_call.1} parent=1 // pred_check_branch
      %23 = sbr.rel (0) target = $region9
    $region8: #{tpu_custom_call.1} parent=1 // pred_region
      _
    $region9: #{tpu_custom_call.1} parent=1 // pred_fallthru
      _
    // Predicated region
    $region10: #{tpu_custom_call.1} parent=1 // pred_check
      _
    $region11: #{tpu_custom_call.1} parent=1 // pred_check_branch
      %25 = sbr.rel (0) target = $region13
    $region12: #{tpu_custom_call.1} parent=1 // pred_region
      _
    $region13: #{tpu_custom_call.1} parent=1 // pred_fallthru
      _
    // Predicated region
    $region14: #{tpu_custom_call.1} parent=1 // pred_check
      _
    $region15: #{tpu_custom_call.1} parent=1 // pred_check_branch
      %27 = sbr.rel (0) target = $region17
    $region16: #{tpu_custom_call.1} parent=1 // pred_region
      %s29 = ssub.s32 12544, 12544
      %30 = vsyncadd [#allocation3], %s29
      %s31 = sshll.u32 [#allocation2], 4
      %s32 = int_to_ptr.vmem [resolvable:$true] %s31
      %37 = dma.hbm_to_vmem [thread:$0]  %s3, 12544, %s32, [#allocation3], 256, 256, 16
    $region17: #{tpu_custom_call.1} parent=1 // pred_fallthru
      _
    // Predicated region
    $region18: #{tpu_custom_call.1} parent=1 // pred_check
      _
    $region19: #{tpu_custom_call.1} parent=1 // pred_check_branch
      %39 = sbr.rel (0) target = $region21
    $region20: #{tpu_custom_call.1} parent=1 // pred_region
      _
    $region21: #{tpu_custom_call.1} parent=1 // pred_fallthru
      _
    // Predicated region
    $region22: #{tpu_custom_call.1} parent=1 // pred_check
      _
    $region23: #{tpu_custom_call.1} parent=1 // pred_check_branch
      %41 = sbr.rel (0) target = $region25
    $region24: #{tpu_custom_call.1} parent=1 // pred_region
      %s43 = ssub.s32 12544, 12544
      %44 = vsyncadd [#allocation6], %s43
      %s45 = sshll.u32 [#allocation5], 4
      %s46 = int_to_ptr.vmem [resolvable:$true] %s45
      %51 = dma.hbm_to_vmem [thread:$0]  %s5, 12544, %s46, [#allocation6], 256, 256, 16
    $region25: #{tpu_custom_call.1} parent=1 // pred_fallthru
      _
    // Predicated region
    $region26: #{tpu_custom_call.1} parent=1 // pred_check
      _
    $region27: #{tpu_custom_call.1} parent=1 // pred_check_branch
      %53 = sbr.rel (0) target = $region29
    $region28: #{tpu_custom_call.1} parent=1 // pred_region
      _
    $region29: #{tpu_custom_call.1} parent=1 // pred_fallthru
      _
    // Predicated region
    $region30: #{tpu_custom_call.1} parent=1 // pred_check
      _
    $region31: #{tpu_custom_call.1} parent=1 // pred_check_branch
      %55 = sbr.rel (0) target = $region33
    $region32: #{tpu_custom_call.1} parent=1 // pred_region
      %s57 = ssub.s32 12544, 12544
      %58 = vsyncadd [#allocation6], %s57
      %s59 = sshll.u32 [#allocation7], 4
      %s60 = int_to_ptr.vmem [resolvable:$true] %s59
      %65 = dma.hbm_to_vmem [thread:$0]  %s7, 12544, %s60, [#allocation6], 256, 256, 16
    $region33: #{tpu_custom_call.1} parent=1 // pred_fallthru
      _
    // Predicated region
    $region34: #{tpu_custom_call.1} parent=1 // pred_check
      _
    $region35: #{tpu_custom_call.1} parent=1 // pred_check_branch
      %67 = sbr.rel (0) target = $region37
    $region36: #{tpu_custom_call.1} parent=1 // pred_region
      _
    $region37: #{tpu_custom_call.1} parent=1 // pred_fallthru
      _
    // Predicated region
    $region38: #{tpu_custom_call.1} parent=1 // pred_check
      _
    $region39: #{tpu_custom_call.1} parent=1 // pred_check_branch
      %69 = sbr.rel (0) target = $region41
    $region40: #{tpu_custom_call.1} parent=1 // pred_region
      %s71 = ssub.s32 3136, 3136
      %72 = vsyncadd [#allocation9], %s71
      %s73 = sshll.u32 [#allocation8], 4
      %s74 = int_to_ptr.vmem [resolvable:$true] %s73
      %79 = dma.hbm_to_vmem [thread:$0]  %s9, 3136, %s74, [#allocation9], 64, 64, 4
    $region41: #{tpu_custom_call.1} parent=1 // pred_fallthru
      _
    // Predicated region
    $region42: #{tpu_custom_call.1} parent=1 // pred_check
      _
    $region43: #{tpu_custom_call.1} parent=1 // pred_check_branch
      %81 = sbr.rel (0) target = $region45
    $region44: #{tpu_custom_call.1} parent=1 // pred_region
      _
    $region45: #{tpu_custom_call.1} parent=1 // pred_fallthru
      _
    // Predicated region
    $region46: #{tpu_custom_call.1} parent=1 // pred_check
      _
    $region47: #{tpu_custom_call.1} parent=1 // pred_check_branch
      %83 = sbr.rel (0) target = $region49
    $region48: #{tpu_custom_call.1} parent=1 // pred_region
      %84 = dma.done [#allocation3], 12544
    $region49: #{tpu_custom_call.1} parent=1 // pred_fallthru
      _
    // Predicated region
    $region50: #{tpu_custom_call.1} parent=1 // pred_check
      _
    $region51: #{tpu_custom_call.1} parent=1 // pred_check_branch
      %86 = sbr.rel (0) target = $region53
    $region52: #{tpu_custom_call.1} parent=1 // pred_region
      %87 = dma.done [#allocation6], 12544
    $region53: #{tpu_custom_call.1} parent=1 // pred_fallthru
      _
    // Predicated region
    $region54: #{tpu_custom_call.1} parent=1 // pred_check
      _
    $region55: #{tpu_custom_call.1} parent=1 // pred_check_branch
      %89 = sbr.rel (0) target = $region57
    $region56: #{tpu_custom_call.1} parent=1 // pred_region
      %90 = dma.done [#allocation6], 12544
    $region57: #{tpu_custom_call.1} parent=1 // pred_fallthru
      _
    // Predicated region
    $region58: #{tpu_custom_call.1} parent=1 // pred_check
      _
    $region59: #{tpu_custom_call.1} parent=1 // pred_check_branch
      %92 = sbr.rel (0) target = $region61
    $region60: #{tpu_custom_call.1} parent=1 // pred_region
      %93 = dma.done [#allocation9], 3136
    $region61: #{tpu_custom_call.1} parent=1 // pred_fallthru
      _
    %v95 = vld [vmem:[%s0] sm:$0xff]
    %v96 = vld [vmem:[%s1] ss:$2 sm:$0xf]
    %98 = vset.pattern.permute.xlu0 0
    %99 = vperm.xlu0 %98, %v95
    %v100 = vpop.permute.xlu0 %99
    %v103 = vlaneseq
    %v104 = vshrl.u32 %v103, 7
    %v105 = vsub.s32 0, %v104
    %v106 = vrot.slane %v96, %v105
    %v107 = vlaneseq
    %v108 = vshrl.u32 %v107, 7
    %v109 = vsub.s32 1, %v108
    %v110 = vrot.slane %v96, %v109
    %v111 = vlaneseq
    %v112 = vshrl.u32 %v111, 7
    %v113 = vsub.s32 2, %v112
    %v114 = vrot.slane %v96, %v113
    %v115 = vlaneseq
    %v116 = vshrl.u32 %v115, 7
    %v117 = vsub.s32 3, %v116
    %v118 = vrot.slane %v96, %v117
    %v123 = vmul.f32 %v100, %v106
    %v124 = vmul.f32 %v100, %v110
    %v125 = vmul.f32 %v100, %v114
    %v126 = vmul.f32 %v100, %v118
    %s127 = scalar_lea.vmem %s1, 1
    %v128 = vld [vmem:[%s127] ss:$2 sm:$0xf]
    %129 = vset.pattern.permute.xlu0 1
    %130 = vperm.xlu0 %129, %v95
    %v131 = vpop.permute.xlu0 %130
    %v134 = vlaneseq
    %v135 = vshrl.u32 %v134, 7
    %v136 = vsub.s32 0, %v135
    %v137 = vrot.slane %v128, %v136
    %v138 = vlaneseq
    %v139 = vshrl.u32 %v138, 7
    %v140 = vsub.s32 1, %v139
    %v141 = vrot.slane %v128, %v140
    %v142 = vlaneseq
    %v143 = vshrl.u32 %v142, 7
    %v144 = vsub.s32 2, %v143
    %v145 = vrot.slane %v128, %v144
    %v146 = vlaneseq
    %v147 = vshrl.u32 %v146, 7
    %v148 = vsub.s32 3, %v147
    %v149 = vrot.slane %v128, %v148
    %v154 = vmul.f32 %v131, %v137
    %v155 = vmul.f32 %v131, %v141
    %v156 = vmul.f32 %v131, %v145
    %v157 = vmul.f32 %v131, %v149
    %v158 = vadd.f32 %v123, %v154
    %v159 = vadd.f32 %v124, %v155
    %v160 = vadd.f32 %v125, %v156
    %v161 = vadd.f32 %v126, %v157
    %v162 = vld [vmem:[%s2] sm:$0xf]
    %v164 = vlaneseq
    %v165 = vshrl.u32 %v164, 7
    %v166 = vsub.s32 0, %v165
    %v167 = vrot.slane %v162, %v166
    %v168 = vlaneseq
    %v169 = vshrl.u32 %v168, 7
    %v170 = vsub.s32 1, %v169
    %v171 = vrot.slane %v162, %v170
    %v172 = vlaneseq
    %v173 = vshrl.u32 %v172, 7
    %v174 = vsub.s32 2, %v173
    %v175 = vrot.slane %v162, %v174
    %v176 = vlaneseq
    %v177 = vshrl.u32 %v176, 7
    %v178 = vsub.s32 3, %v177
    %v179 = vrot.slane %v162, %v178
    %v184 = vadd.f32 %v158, %v167
    %v185 = vadd.f32 %v159, %v171
    %v186 = vadd.f32 %v160, %v175
    %v187 = vadd.f32 %v161, %v179
    %v188 = vmax.f32 %v184, 0.0
    %v189 = vmax.f32 %v185, 0.0
    %v190 = vmax.f32 %v186, 0.0
    %v191 = vmax.f32 %v187, 0.0
    %v192 = vpack.c.bf16 %v188, %v188
    %v193 = vpack.c.bf16 %v189, %v189
    %v194 = vpack.c.bf16 %v190, %v190
    %v195 = vpack.c.bf16 %v191, %v191
    %v196 = vld [vmem:[#allocation2] sm:$0xff]
    %v197 = vld [vmem:[#allocation2 + $0x8] sm:$0xff]
    %v198 = vld [vmem:[#allocation2 + $0x10] sm:$0xff]
    %v199 = vld [vmem:[#allocation2 + $0x18] sm:$0xff]
    %v200 = vld [vmem:[#allocation2 + $0x20] sm:$0xff]
    %v201 = vld [vmem:[#allocation2 + $0x28] sm:$0xff]
    %v202 = vld [vmem:[#allocation2 + $0x30] sm:$0xff]
    %v203 = vld [vmem:[#allocation2 + $0x38] sm:$0xff]
    %v204 = vld [vmem:[#allocation2 + $0x40] sm:$0xff]
    %v205 = vld [vmem:[#allocation2 + $0x48] sm:$0xff]
    %v206 = vld [vmem:[#allocation2 + $0x50] sm:$0xff]
    %v207 = vld [vmem:[#allocation2 + $0x58] sm:$0xff]
    %v208 = vld [vmem:[#allocation2 + $0x60] sm:$0xff]
    %v209 = vld [vmem:[#allocation2 + $0x68] sm:$0xff]
    %v210 = vld [vmem:[#allocation2 + $0x70] sm:$0xff]
    %v211 = vld [vmem:[#allocation2 + $0x78] sm:$0xff]
    %v212 = vld [vmem:[#allocation2 + $0x80] sm:$0xff]
    %v213 = vld [vmem:[#allocation2 + $0x88] sm:$0xff]
    %v214 = vld [vmem:[#allocation2 + $0x90] sm:$0xff]
    %v215 = vld [vmem:[#allocation2 + $0x98] sm:$0xff]
    %v216 = vld [vmem:[#allocation2 + $0xa0] sm:$0xff]
    %v217 = vld [vmem:[#allocation2 + $0xa8] sm:$0xff]
    %v218 = vld [vmem:[#allocation2 + $0xb0] sm:$0xff]
    %v219 = vld [vmem:[#allocation2 + $0xb8] sm:$0xff]
    %v220 = vld [vmem:[#allocation2 + $0xc0] sm:$0xff]
    %v221 = vld [vmem:[#allocation2 + $0xc8] sm:$0xff]
    %v222 = vld [vmem:[#allocation2 + $0xd0] sm:$0xff]
    %v223 = vld [vmem:[#allocation2 + $0xd8] sm:$0xff]
    %v224 = vld [vmem:[#allocation2 + $0xe0] sm:$0xff]
    %v225 = vld [vmem:[#allocation2 + $0xe8] sm:$0xff]
    %v226 = vld [vmem:[#allocation2 + $0xf0] sm:$0xff]
    %v227 = vld [vmem:[#allocation2 + $0xf8] sm:$0xff]
    %v228 = vld [vmem:[#allocation2 + $0x100] sm:$0xff]
    %v229 = vld [vmem:[#allocation2 + $0x108] sm:$0xff]
    %v230 = vld [vmem:[#allocation2 + $0x110] sm:$0xff]
    %v231 = vld [vmem:[#allocation2 + $0x118] sm:$0xff]
    %v232 = vld [vmem:[#allocation2 + $0x120] sm:$0xff]
    %v233 = vld [vmem:[#allocation2 + $0x128] sm:$0xff]
    %v234 = vld [vmem:[#allocation2 + $0x130] sm:$0xff]
    %v235 = vld [vmem:[#allocation2 + $0x138] sm:$0xff]
    %v236 = vld [vmem:[#allocation2 + $0x140] sm:$0xff]
    %v237 = vld [vmem:[#allocation2 + $0x148] sm:$0xff]
    %v238 = vld [vmem:[#allocation2 + $0x150] sm:$0xff]
    %v239 = vld [vmem:[#allocation2 + $0x158] sm:$0xff]
    %v240 = vld [vmem:[#allocation2 + $0x160] sm:$0xff]
    %v241 = vld [vmem:[#allocation2 + $0x168] sm:$0xff]
    %v242 = vld [vmem:[#allocation2 + $0x170] sm:$0xff]
    %v243 = vld [vmem:[#allocation2 + $0x178] sm:$0xff]
    %v244 = vld [vmem:[#allocation2 + $0x180] sm:$0xff]
    %v245 = vld [vmem:[#allocation2 + $0x188] sm:$0xff]
    %v246 = vld [vmem:[#allocation2 + $0x190] sm:$0xff]
    %v247 = vld [vmem:[#allocation2 + $0x198] sm:$0xff]
    %v248 = vld [vmem:[#allocation2 + $0x1a0] sm:$0xff]
    %v249 = vld [vmem:[#allocation2 + $0x1a8] sm:$0xff]
    %v250 = vld [vmem:[#allocation2 + $0x1b0] sm:$0xff]
    %v251 = vld [vmem:[#allocation2 + $0x1b8] sm:$0xff]
    %v252 = vld [vmem:[#allocation2 + $0x1c0] sm:$0xff]
    %v253 = vld [vmem:[#allocation2 + $0x1c8] sm:$0xff]
    %v254 = vld [vmem:[#allocation2 + $0x1d0] sm:$0xff]
    %v255 = vld [vmem:[#allocation2 + $0x1d8] sm:$0xff]
    %v256 = vld [vmem:[#allocation2 + $0x1e0] sm:$0xff]
    %v257 = vld [vmem:[#allocation2 + $0x1e8] sm:$0xff]
    %v258 = vld [vmem:[#allocation2 + $0x1f0] sm:$0xff]
    %v259 = vld [vmem:[#allocation2 + $0x1f8] sm:$0xff]
    %v260 = vld [vmem:[#allocation2 + $0x200] sm:$0xff]
    %v261 = vld [vmem:[#allocation2 + $0x208] sm:$0xff]
    %v262 = vld [vmem:[#allocation2 + $0x210] sm:$0xff]
    %v263 = vld [vmem:[#allocation2 + $0x218] sm:$0xff]
    %v264 = vld [vmem:[#allocation2 + $0x220] sm:$0xff]
    %v265 = vld [vmem:[#allocation2 + $0x228] sm:$0xff]
    %v266 = vld [vmem:[#allocation2 + $0x230] sm:$0xff]
    %v267 = vld [vmem:[#allocation2 + $0x238] sm:$0xff]
    %v268 = vld [vmem:[#allocation2 + $0x240] sm:$0xff]
    %v269 = vld [vmem:[#allocation2 + $0x248] sm:$0xff]
    %v270 = vld [vmem:[#allocation2 + $0x250] sm:$0xff]
    %v271 = vld [vmem:[#allocation2 + $0x258] sm:$0xff]
    %v272 = vld [vmem:[#allocation2 + $0x260] sm:$0xff]
    %v273 = vld [vmem:[#allocation2 + $0x268] sm:$0xff]
    %v274 = vld [vmem:[#allocation2 + $0x270] sm:$0xff]
    %v275 = vld [vmem:[#allocation2 + $0x278] sm:$0xff]
    %v276 = vld [vmem:[#allocation2 + $0x280] sm:$0xff]
    %v277 = vld [vmem:[#allocation2 + $0x288] sm:$0xff]
    %v278 = vld [vmem:[#allocation2 + $0x290] sm:$0xff]
    %v279 = vld [vmem:[#allocation2 + $0x298] sm:$0xff]
    %v280 = vld [vmem:[#allocation2 + $0x2a0] sm:$0xff]
    %v281 = vld [vmem:[#allocation2 + $0x2a8] sm:$0xff]
    %v282 = vld [vmem:[#allocation2 + $0x2b0] sm:$0xff]
    %v283 = vld [vmem:[#allocation2 + $0x2b8] sm:$0xff]
    %v284 = vld [vmem:[#allocation2 + $0x2c0] sm:$0xff]
    %v285 = vld [vmem:[#allocation2 + $0x2c8] sm:$0xff]
    %v286 = vld [vmem:[#allocation2 + $0x2d0] sm:$0xff]
    %v287 = vld [vmem:[#allocation2 + $0x2d8] sm:$0xff]
    %v288 = vld [vmem:[#allocation2 + $0x2e0] sm:$0xff]
    %v289 = vld [vmem:[#allocation2 + $0x2e8] sm:$0xff]
    %v290 = vld [vmem:[#allocation2 + $0x2f0] sm:$0xff]
    %v291 = vld [vmem:[#allocation2 + $0x2f8] sm:$0xff]
    %v292 = vld [vmem:[#allocation2 + $0x300] sm:$0xff]
    %v293 = vld [vmem:[#allocation2 + $0x308] sm:$0xff]
    %v294 = vld [vmem:[%s4] sm:$0xf]
    %v296 = vlaneseq
    %v297 = vshrl.u32 %v296, 7
    %v298 = vsub.s32 0, %v297
    %v299 = vrot.slane %v294, %v298
    %v300 = vlaneseq
    %v301 = vshrl.u32 %v300, 7
    %v302 = vsub.s32 1, %v301
    %v303 = vrot.slane %v294, %v302
    %v304 = vlaneseq
    %v305 = vshrl.u32 %v304, 7
    %v306 = vsub.s32 2, %v305
    %v307 = vrot.slane %v294, %v306
    %v308 = vlaneseq
    %v309 = vshrl.u32 %v308, 7
    %v310 = vsub.s32 3, %v309
    %v311 = vrot.slane %v294, %v310
    %v414 = vunpack.c.l.b16 %v196
    %v415 = vunpack.c.h.b16 %v196
    %v416 = vunpack.c.l.b16 %v197
    %v417 = vunpack.c.h.b16 %v197
    %v418 = vunpack.c.l.b16 %v198
    %v419 = vunpack.c.h.b16 %v198
    %v420 = vunpack.c.l.b16 %v199
    %v421 = vunpack.c.h.b16 %v199
    %v422 = vunpack.c.l.b16 %v200
    %v423 = vunpack.c.h.b16 %v200
    %v424 = vunpack.c.l.b16 %v201
    %v425 = vunpack.c.h.b16 %v201
    %v426 = vunpack.c.l.b16 %v202
    %v427 = vunpack.c.h.b16 %v202
    %v428 = vunpack.c.l.b16 %v203
    %v429 = vunpack.c.h.b16 %v203
    %v430 = vunpack.c.l.b16 %v204
    %v431 = vunpack.c.h.b16 %v204
    %v432 = vunpack.c.l.b16 %v205
    %v433 = vunpack.c.h.b16 %v205
    %v434 = vunpack.c.l.b16 %v206
    %v435 = vunpack.c.h.b16 %v206
    %v436 = vunpack.c.l.b16 %v207
    %v437 = vunpack.c.h.b16 %v207
    %v438 = vunpack.c.l.b16 %v208
    %v439 = vunpack.c.h.b16 %v208
    %v440 = vunpack.c.l.b16 %v209
    %v441 = vunpack.c.h.b16 %v209
    %v442 = vunpack.c.l.b16 %v210
    %v443 = vunpack.c.h.b16 %v210
    %v444 = vunpack.c.l.b16 %v211
    %v445 = vunpack.c.h.b16 %v211
    %v446 = vunpack.c.l.b16 %v212
    %v447 = vunpack.c.h.b16 %v212
    %v448 = vunpack.c.l.b16 %v213
    %v449 = vunpack.c.h.b16 %v213
    %v450 = vunpack.c.l.b16 %v214
    %v451 = vunpack.c.h.b16 %v214
    %v452 = vunpack.c.l.b16 %v215
    %v453 = vunpack.c.h.b16 %v215
    %v454 = vunpack.c.l.b16 %v216
    %v455 = vunpack.c.h.b16 %v216
    %v456 = vunpack.c.l.b16 %v217
    %v457 = vunpack.c.h.b16 %v217
    %v458 = vunpack.c.l.b16 %v218
    %v459 = vunpack.c.h.b16 %v218
    %v460 = vunpack.c.l.b16 %v219
    %v461 = vunpack.c.h.b16 %v219
    %v462 = vunpack.c.l.b16 %v220
    %v463 = vunpack.c.h.b16 %v220
    %v464 = vunpack.c.l.b16 %v221
    %v465 = vunpack.c.h.b16 %v221
    %v466 = vunpack.c.l.b16 %v222
    %v467 = vunpack.c.h.b16 %v222
    %v468 = vunpack.c.l.b16 %v223
    %v469 = vunpack.c.h.b16 %v223
    %v470 = vunpack.c.l.b16 %v224
    %v471 = vunpack.c.h.b16 %v224
    %v472 = vunpack.c.l.b16 %v225
    %v473 = vunpack.c.h.b16 %v225
    %v474 = vunpack.c.l.b16 %v226
    %v475 = vunpack.c.h.b16 %v226
    %v476 = vunpack.c.l.b16 %v227
    %v477 = vunpack.c.h.b16 %v227
    %v478 = vunpack.c.l.b16 %v228
    %v479 = vunpack.c.h.b16 %v228
    %v480 = vunpack.c.l.b16 %v229
    %v481 = vunpack.c.h.b16 %v229
    %v482 = vunpack.c.l.b16 %v230
    %v483 = vunpack.c.h.b16 %v230
    %v484 = vunpack.c.l.b16 %v231
    %v485 = vunpack.c.h.b16 %v231
    %v486 = vunpack.c.l.b16 %v232
    %v487 = vunpack.c.h.b16 %v232
    %v488 = vunpack.c.l.b16 %v233
    %v489 = vunpack.c.h.b16 %v233
    %v490 = vunpack.c.l.b16 %v234
    %v491 = vunpack.c.h.b16 %v234
    %v492 = vunpack.c.l.b16 %v235
    %v493 = vunpack.c.h.b16 %v235
    %v494 = vunpack.c.l.b16 %v236
    %v495 = vunpack.c.h.b16 %v236
    %v496 = vunpack.c.l.b16 %v237
    %v497 = vunpack.c.h.b16 %v237
    %v498 = vunpack.c.l.b16 %v238
    %v499 = vunpack.c.h.b16 %v238
    %v500 = vunpack.c.l.b16 %v239
    %v501 = vunpack.c.h.b16 %v239
    %v502 = vunpack.c.l.b16 %v240
    %v503 = vunpack.c.h.b16 %v240
    %v504 = vunpack.c.l.b16 %v241
    %v505 = vunpack.c.h.b16 %v241
    %v506 = vunpack.c.l.b16 %v242
    %v507 = vunpack.c.h.b16 %v242
    %v508 = vunpack.c.l.b16 %v243
    %v509 = vunpack.c.h.b16 %v243
    %v510 = vunpack.c.l.b16 %v244
    %v511 = vunpack.c.h.b16 %v244
    %v512 = vunpack.c.l.b16 %v245
    %v513 = vunpack.c.h.b16 %v245
    %v514 = vunpack.c.l.b16 %v246
    %v515 = vunpack.c.h.b16 %v246
    %v516 = vunpack.c.l.b16 %v247
    %v517 = vunpack.c.h.b16 %v247
    %v518 = vunpack.c.l.b16 %v248
    %v519 = vunpack.c.h.b16 %v248
    %v520 = vunpack.c.l.b16 %v249
    %v521 = vunpack.c.h.b16 %v249
    %v522 = vunpack.c.l.b16 %v250
    %v523 = vunpack.c.h.b16 %v250
    %v524 = vunpack.c.l.b16 %v251
    %v525 = vunpack.c.h.b16 %v251
    %v526 = vunpack.c.l.b16 %v252
    %v527 = vunpack.c.h.b16 %v252
    %v528 = vunpack.c.l.b16 %v253
    %v529 = vunpack.c.h.b16 %v253
    %v530 = vunpack.c.l.b16 %v254
    %v531 = vunpack.c.h.b16 %v254
    %v532 = vunpack.c.l.b16 %v255
    %v533 = vunpack.c.h.b16 %v255
    %v534 = vunpack.c.l.b16 %v256
    %v535 = vunpack.c.h.b16 %v256
    %v536 = vunpack.c.l.b16 %v257
    %v537 = vunpack.c.h.b16 %v257
    %v538 = vunpack.c.l.b16 %v258
    %v539 = vunpack.c.h.b16 %v258
    %v540 = vunpack.c.l.b16 %v259
    %v541 = vunpack.c.h.b16 %v259
    %v542 = vunpack.c.l.b16 %v260
    %v543 = vunpack.c.h.b16 %v260
    %v544 = vunpack.c.l.b16 %v261
    %v545 = vunpack.c.h.b16 %v261
    %v546 = vunpack.c.l.b16 %v262
    %v547 = vunpack.c.h.b16 %v262
    %v548 = vunpack.c.l.b16 %v263
    %v549 = vunpack.c.h.b16 %v263
    %v550 = vunpack.c.l.b16 %v264
    %v551 = vunpack.c.h.b16 %v264
    %v552 = vunpack.c.l.b16 %v265
    %v553 = vunpack.c.h.b16 %v265
    %v554 = vunpack.c.l.b16 %v266
    %v555 = vunpack.c.h.b16 %v266
    %v556 = vunpack.c.l.b16 %v267
    %v557 = vunpack.c.h.b16 %v267
    %v558 = vunpack.c.l.b16 %v268
    %v559 = vunpack.c.h.b16 %v268
    %v560 = vunpack.c.l.b16 %v269
    %v561 = vunpack.c.h.b16 %v269
    %v562 = vunpack.c.l.b16 %v270
    %v563 = vunpack.c.h.b16 %v270
    %v564 = vunpack.c.l.b16 %v271
    %v565 = vunpack.c.h.b16 %v271
    %v566 = vunpack.c.l.b16 %v272
    %v567 = vunpack.c.h.b16 %v272
    %v568 = vunpack.c.l.b16 %v273
    %v569 = vunpack.c.h.b16 %v273
    %v570 = vunpack.c.l.b16 %v274
    %v571 = vunpack.c.h.b16 %v274
    %v572 = vunpack.c.l.b16 %v275
    %v573 = vunpack.c.h.b16 %v275
    %v574 = vunpack.c.l.b16 %v276
    %v575 = vunpack.c.h.b16 %v276
    %v576 = vunpack.c.l.b16 %v277
    %v577 = vunpack.c.h.b16 %v277
    %v578 = vunpack.c.l.b16 %v278
    %v579 = vunpack.c.h.b16 %v278
    %v580 = vunpack.c.l.b16 %v279
    %v581 = vunpack.c.h.b16 %v279
    %v582 = vunpack.c.l.b16 %v280
    %v583 = vunpack.c.h.b16 %v280
    %v584 = vunpack.c.l.b16 %v281
    %v585 = vunpack.c.h.b16 %v281
    %v586 = vunpack.c.l.b16 %v282
    %v587 = vunpack.c.h.b16 %v282
    %v588 = vunpack.c.l.b16 %v283
    %v589 = vunpack.c.h.b16 %v283
    %v590 = vunpack.c.l.b16 %v284
    %v591 = vunpack.c.h.b16 %v284
    %v592 = vunpack.c.l.b16 %v285
    %v593 = vunpack.c.h.b16 %v285
    %v594 = vunpack.c.l.b16 %v286
    %v595 = vunpack.c.h.b16 %v286
    %v596 = vunpack.c.l.b16 %v287
    %v597 = vunpack.c.h.b16 %v287
    %v598 = vunpack.c.l.b16 %v288
    %v599 = vunpack.c.h.b16 %v288
    %v600 = vunpack.c.l.b16 %v289
    %v601 = vunpack.c.h.b16 %v289
    %v602 = vunpack.c.l.b16 %v290
    %v603 = vunpack.c.h.b16 %v290
    %v604 = vunpack.c.l.b16 %v291
    %v605 = vunpack.c.h.b16 %v291
    %v606 = vunpack.c.l.b16 %v292
    %v607 = vunpack.c.h.b16 %v292
    %v608 = vunpack.c.l.b16 %v293
    %v609 = vunpack.c.h.b16 %v293
    %v610 = vpack.c.b16 %v418, %v414
    %v611 = vpack.c.b16 %v419, %v415
    %v612 = vpack.c.b16 %v420, %v416
    %v613 = vpack.c.b16 %v421, %v417
    %v614 = vpack.c.b16 %v426, %v422
    %v615 = vpack.c.b16 %v427, %v423
    %v616 = vpack.c.b16 %v428, %v424
    %v617 = vpack.c.b16 %v429, %v425
    %v618 = vpack.c.b16 %v434, %v430
    %v619 = vpack.c.b16 %v435, %v431
    %v620 = vpack.c.b16 %v436, %v432
    %v621 = vpack.c.b16 %v437, %v433
    %v622 = vpack.c.b16 %v442, %v438
    %v623 = vpack.c.b16 %v443, %v439
    %v624 = vpack.c.b16 %v444, %v440
    %v625 = vpack.c.b16 %v445, %v441
    %v626 = vpack.c.b16 %v450, %v446
    %v627 = vpack.c.b16 %v451, %v447
    %v628 = vpack.c.b16 %v452, %v448
    %v629 = vpack.c.b16 %v453, %v449
    %v630 = vpack.c.b16 %v458, %v454
    %v631 = vpack.c.b16 %v459, %v455
    %v632 = vpack.c.b16 %v460, %v456
    %v633 = vpack.c.b16 %v461, %v457
    %v634 = vpack.c.b16 %v466, %v462
    %v635 = vpack.c.b16 %v467, %v463
    %v636 = vpack.c.b16 %v468, %v464
    %v637 = vpack.c.b16 %v469, %v465
    %v638 = vpack.c.b16 %v474, %v470
    %v639 = vpack.c.b16 %v475, %v471
    %v640 = vpack.c.b16 %v476, %v472
    %v641 = vpack.c.b16 %v477, %v473
    %v642 = vpack.c.b16 %v482, %v478
    %v643 = vpack.c.b16 %v483, %v479
    %v644 = vpack.c.b16 %v484, %v480
    %v645 = vpack.c.b16 %v485, %v481
    %v646 = vpack.c.b16 %v490, %v486
    %v647 = vpack.c.b16 %v491, %v487
    %v648 = vpack.c.b16 %v492, %v488
    %v649 = vpack.c.b16 %v493, %v489
    %v650 = vpack.c.b16 %v498, %v494
    %v651 = vpack.c.b16 %v499, %v495
    %v652 = vpack.c.b16 %v500, %v496
    %v653 = vpack.c.b16 %v501, %v497
    %v654 = vpack.c.b16 %v506, %v502
    %v655 = vpack.c.b16 %v507, %v503
    %v656 = vpack.c.b16 %v508, %v504
    %v657 = vpack.c.b16 %v509, %v505
    %v658 = vpack.c.b16 %v514, %v510
    %v659 = vpack.c.b16 %v515, %v511
    %v660 = vpack.c.b16 %v516, %v512
    %v661 = vpack.c.b16 %v517, %v513
    %v662 = vpack.c.b16 %v522, %v518
    %v663 = vpack.c.b16 %v523, %v519
    %v664 = vpack.c.b16 %v524, %v520
    %v665 = vpack.c.b16 %v525, %v521
    %v666 = vpack.c.b16 %v530, %v526
    %v667 = vpack.c.b16 %v531, %v527
    %v668 = vpack.c.b16 %v532, %v528
    %v669 = vpack.c.b16 %v533, %v529
    %v670 = vpack.c.b16 %v538, %v534
    %v671 = vpack.c.b16 %v539, %v535
    %v672 = vpack.c.b16 %v540, %v536
    %v673 = vpack.c.b16 %v541, %v537
    %v674 = vpack.c.b16 %v546, %v542
    %v675 = vpack.c.b16 %v547, %v543
    %v676 = vpack.c.b16 %v548, %v544
    %v677 = vpack.c.b16 %v549, %v545
    %v678 = vpack.c.b16 %v554, %v550
    %v679 = vpack.c.b16 %v555, %v551
    %v680 = vpack.c.b16 %v556, %v552
    %v681 = vpack.c.b16 %v557, %v553
    %v682 = vpack.c.b16 %v562, %v558
    %v683 = vpack.c.b16 %v563, %v559
    %v684 = vpack.c.b16 %v564, %v560
    %v685 = vpack.c.b16 %v565, %v561
    %v686 = vpack.c.b16 %v570, %v566
    %v687 = vpack.c.b16 %v571, %v567
    %v688 = vpack.c.b16 %v572, %v568
    %v689 = vpack.c.b16 %v573, %v569
    %v690 = vpack.c.b16 %v578, %v574
    %v691 = vpack.c.b16 %v579, %v575
    %v692 = vpack.c.b16 %v580, %v576
    %v693 = vpack.c.b16 %v581, %v577
    %v694 = vpack.c.b16 %v586, %v582
    %v695 = vpack.c.b16 %v587, %v583
    %v696 = vpack.c.b16 %v588, %v584
    %v697 = vpack.c.b16 %v589, %v585
    %v698 = vpack.c.b16 %v594, %v590
    %v699 = vpack.c.b16 %v595, %v591
    %v700 = vpack.c.b16 %v596, %v592
    %v701 = vpack.c.b16 %v597, %v593
    %v702 = vpack.c.b16 %v602, %v598
    %v703 = vpack.c.b16 %v603, %v599
    %v704 = vpack.c.b16 %v604, %v600
    %v705 = vpack.c.b16 %v605, %v601
    %v706 = vpack.c.b16 %v606, %v606
    %v707 = vpack.c.b16 %v607, %v607
    %v708 = vpack.c.b16 %v608, %v608
    %v709 = vpack.c.b16 %v609, %v609
    %vm806 = vcmask 64512
    %v808 = vsel %vm806, %v195, 0
    %vm810 = vcmask 1043456
    %v812 = vsel %vm810, %v706, 0
    %v815 = vsel %vm810, %v707, 0
    %v818 = vsel %vm810, %v708, 0
    %v821 = vsel %vm810, %v709, 0
    %823 = vmatprep.subr.bf16.mxu0 %v611
    %824 = vmatpush1.bf16.msra.mxu0 %v610
    %825 = vmatprep.subr.bf16.mxu0 %v615
    %826 = vmatpush1.bf16.msra.mxu0 %v614
    %827 = vmatprep.subr.bf16.mxu0 %v619
    %828 = vmatpush1.bf16.msra.mxu0 %v618
    %829 = vmatprep.subr.bf16.mxu0 %v623
    %830 = vmatpush1.bf16.msra.mxu0 %v622
    %831 = vmatprep.subr.bf16.mxu0 %v627
    %832 = vmatpush1.bf16.msra.mxu0 %v626
    %833 = vmatprep.subr.bf16.mxu0 %v631
    %834 = vmatpush1.bf16.msra.mxu0 %v630
    %835 = vmatprep.subr.bf16.mxu0 %v635
    %836 = vmatpush1.bf16.msra.mxu0 %v634
    %837 = vmatprep.subr.bf16.mxu0 %v639
    %838 = vmatpush1.bf16.msra.mxu0 %v638
    %839 = vmatprep.subr.bf16.mxu0 %v643
    %840 = vmatpush1.bf16.msra.mxu0 %v642
    %841 = vmatprep.subr.bf16.mxu0 %v647
    %842 = vmatpush1.bf16.msra.mxu0 %v646
    %843 = vmatprep.subr.bf16.mxu0 %v651
    %844 = vmatpush1.bf16.msra.mxu0 %v650
    %845 = vmatprep.subr.bf16.mxu0 %v655
    %846 = vmatpush1.bf16.msra.mxu0 %v654
    %847 = vmatprep.subr.bf16.mxu0 %v659
    %848 = vmatpush1.bf16.msra.mxu0 %v658
    %849 = vmatprep.subr.bf16.mxu0 %v663
    %850 = vmatpush1.bf16.msra.mxu0 %v662
    %851 = vmatprep.subr.bf16.mxu0 %v667
    %852 = vmatpush1.bf16.msra.mxu0 %v666
    %853 = vmatprep.subr.bf16.mxu0 %v671
    %854 = vmatpush1.bf16.msra.mxu0 %v670
    %855 = vmatprep.mubr.bf16.mxu0 %v193
    %856 = vmatmul.mubr.bf16.gmra.mrb[0].mxu0 %v192
    %v857 = vpop.f32.mrb[0].mxu0
    %v858 = vadd.f32 %v299, %v857
    %v859 = vpop.f32.mrb[0].mxu0
    %v860 = vadd.f32 %v303, %v859
    %v861 = vpop.f32.mrb[0].mxu0
    %v862 = vpop.f32.mrb[0].mxu0
    %863 = vdwg.mxu0
    %864 = vmatprep.subr.bf16.mxu0 %v675
    %865 = vmatpush1.bf16.msra.mxu0 %v674
    %866 = vmatprep.subr.bf16.mxu0 %v679
    %867 = vmatpush1.bf16.msra.mxu0 %v678
    %868 = vmatprep.subr.bf16.mxu0 %v683
    %869 = vmatpush1.bf16.msra.mxu0 %v682
    %870 = vmatprep.subr.bf16.mxu0 %v687
    %871 = vmatpush1.bf16.msra.mxu0 %v686
    %872 = vmatprep.subr.bf16.mxu0 %v691
    %873 = vmatpush1.bf16.msra.mxu0 %v690
    %874 = vmatprep.subr.bf16.mxu0 %v695
    %875 = vmatpush1.bf16.msra.mxu0 %v694
    %876 = vmatprep.subr.bf16.mxu0 %v699
    %877 = vmatpush1.bf16.msra.mxu0 %v698
    %878 = vmatprep.subr.bf16.mxu0 %v703
    %879 = vmatpush1.bf16.msra.mxu0 %v702
    %880 = vmatprep.subr.bf16.mxu0 %v815
    %881 = vmatpush1.bf16.msra.mxu0 %v812
    %882 = vmatprep.subr.bf16.mxu0 0
    %883 = vmatpush1.bf16.msra.mxu0 0
    %884 = vmatprep.subr.bf16.mxu0 0
    %885 = vmatpush1.bf16.msra.mxu0 0
    %886 = vmatprep.subr.bf16.mxu0 0
    %887 = vmatpush1.bf16.msra.mxu0 0
    %888 = vmatprep.subr.bf16.mxu0 0
    %889 = vmatpush1.bf16.msra.mxu0 0
    %890 = vmatprep.subr.bf16.mxu0 0
    %891 = vmatpush1.bf16.msra.mxu0 0
    %892 = vmatprep.subr.bf16.mxu0 0
    %893 = vmatpush1.bf16.msra.mxu0 0
    %894 = vmatprep.subr.bf16.mxu0 0
    %895 = vmatpush1.bf16.msra.mxu0 0
    %896 = vmatprep.mubr.bf16.mxu0 %v808
    %897 = vmatmul.mubr.bf16.gmra.mrb[0].mxu0 %v194
    %v898 = vpop.f32.mrb[0].mxu0
    %v899 = vadd.f32 %v858, %v898
    %v900 = vpop.f32.mrb[0].mxu0
    %v901 = vadd.f32 %v860, %v900
    %v902 = vpop.f32.mrb[0].mxu0
    %v903 = vpop.f32.mrb[0].mxu0
    %904 = vdwg.mxu0
    %905 = vmatprep.subr.bf16.mxu0 %v613
    %906 = vmatpush1.bf16.msra.mxu0 %v612
    %907 = vmatprep.subr.bf16.mxu0 %v617
    %908 = vmatpush1.bf16.msra.mxu0 %v616
    %909 = vmatprep.subr.bf16.mxu0 %v621
    %910 = vmatpush1.bf16.msra.mxu0 %v620
    %911 = vmatprep.subr.bf16.mxu0 %v625
    %912 = vmatpush1.bf16.msra.mxu0 %v624
    %913 = vmatprep.subr.bf16.mxu0 %v629
    %914 = vmatpush1.bf16.msra.mxu0 %v628
    %915 = vmatprep.subr.bf16.mxu0 %v633
    %916 = vmatpush1.bf16.msra.mxu0 %v632
    %917 = vmatprep.subr.bf16.mxu0 %v637
    %918 = vmatpush1.bf16.msra.mxu0 %v636
    %919 = vmatprep.subr.bf16.mxu0 %v641
    %920 = vmatpush1.bf16.msra.mxu0 %v640
    %921 = vmatprep.subr.bf16.mxu0 %v645
    %922 = vmatpush1.bf16.msra.mxu0 %v644
    %923 = vmatprep.subr.bf16.mxu0 %v649
    %924 = vmatpush1.bf16.msra.mxu0 %v648
    %925 = vmatprep.subr.bf16.mxu0 %v653
    %926 = vmatpush1.bf16.msra.mxu0 %v652
    %927 = vmatprep.subr.bf16.mxu0 %v657
    %928 = vmatpush1.bf16.msra.mxu0 %v656
    %929 = vmatprep.subr.bf16.mxu0 %v661
    %930 = vmatpush1.bf16.msra.mxu0 %v660
    %931 = vmatprep.subr.bf16.mxu0 %v665
    %932 = vmatpush1.bf16.msra.mxu0 %v664
    %933 = vmatprep.subr.bf16.mxu0 %v669
    %934 = vmatpush1.bf16.msra.mxu0 %v668
    %935 = vmatprep.subr.bf16.mxu0 %v673
    %936 = vmatpush1.bf16.msra.mxu0 %v672
    %937 = vmatprep.mubr.bf16.mxu0 %v193
    %938 = vmatmul.mubr.bf16.gmra.mrb[0].mxu0 %v192
    %v939 = vpop.f32.mrb[0].mxu0
    %v940 = vadd.f32 %v307, %v939
    %v941 = vpop.f32.mrb[0].mxu0
    %v942 = vadd.f32 %v311, %v941
    %v943 = vpop.f32.mrb[0].mxu0
    %v944 = vpop.f32.mrb[0].mxu0
    %945 = vdwg.mxu0
    %946 = vmatprep.subr.bf16.mxu0 %v677
    %947 = vmatpush1.bf16.msra.mxu0 %v676
    %948 = vmatprep.subr.bf16.mxu0 %v681
    %949 = vmatpush1.bf16.msra.mxu0 %v680
    %950 = vmatprep.subr.bf16.mxu0 %v685
    %951 = vmatpush1.bf16.msra.mxu0 %v684
    %952 = vmatprep.subr.bf16.mxu0 %v689
    %953 = vmatpush1.bf16.msra.mxu0 %v688
    %954 = vmatprep.subr.bf16.mxu0 %v693
    %955 = vmatpush1.bf16.msra.mxu0 %v692
    %956 = vmatprep.subr.bf16.mxu0 %v697
    %957 = vmatpush1.bf16.msra.mxu0 %v696
    %958 = vmatprep.subr.bf16.mxu0 %v701
    %959 = vmatpush1.bf16.msra.mxu0 %v700
    %960 = vmatprep.subr.bf16.mxu0 %v705
    %961 = vmatpush1.bf16.msra.mxu0 %v704
    %962 = vmatprep.subr.bf16.mxu0 %v821
    %963 = vmatpush1.bf16.msra.mxu0 %v818
    %964 = vmatprep.subr.bf16.mxu0 0
    %965 = vmatpush1.bf16.msra.mxu0 0
    %966 = vmatprep.subr.bf16.mxu0 0
    %967 = vmatpush1.bf16.msra.mxu0 0
    %968 = vmatprep.subr.bf16.mxu0 0
    %969 = vmatpush1.bf16.msra.mxu0 0
    %970 = vmatprep.subr.bf16.mxu0 0
    %971 = vmatpush1.bf16.msra.mxu0 0
    %972 = vmatprep.subr.bf16.mxu0 0
    %973 = vmatpush1.bf16.msra.mxu0 0
    %974 = vmatprep.subr.bf16.mxu0 0
    %975 = vmatpush1.bf16.msra.mxu0 0
    %976 = vmatprep.subr.bf16.mxu0 0
    %977 = vmatpush1.bf16.msra.mxu0 0
    %978 = vmatprep.mubr.bf16.mxu0 %v808
    %979 = vmatmul.mubr.bf16.gmra.mrb[0].mxu0 %v194
    %v980 = vpop.f32.mrb[0].mxu0
    %v981 = vadd.f32 %v940, %v980
    %v982 = vpop.f32.mrb[0].mxu0
    %v983 = vadd.f32 %v942, %v982
    %v984 = vpop.f32.mrb[0].mxu0
    %v985 = vpop.f32.mrb[0].mxu0
    %986 = vdwg.mxu0
    %v987 = vmax.f32 %v899, 0.0
    %v988 = vmax.f32 %v901, 0.0
    %v989 = vmax.f32 %v981, 0.0
    %v990 = vmax.f32 %v983, 0.0
    %v991 = vpack.c.bf16 %v987, %v987
    %v992 = vpack.c.bf16 %v988, %v988
    %v993 = vpack.c.bf16 %v989, %v989
    %v994 = vpack.c.bf16 %v990, %v990
    %v995 = vld [vmem:[#allocation5] sm:$0xff]
    %v996 = vld [vmem:[#allocation5 + $0x8] sm:$0xff]
    %v997 = vld [vmem:[#allocation5 + $0x10] sm:$0xff]
    %v998 = vld [vmem:[#allocation5 + $0x18] sm:$0xff]
    %v999 = vld [vmem:[#allocation5 + $0x20] sm:$0xff]
    %v1000 = vld [vmem:[#allocation5 + $0x28] sm:$0xff]
    %v1001 = vld [vmem:[#allocation5 + $0x30] sm:$0xff]
    %v1002 = vld [vmem:[#allocation5 + $0x38] sm:$0xff]
    %v1003 = vld [vmem:[#allocation5 + $0x40] sm:$0xff]
    %v1004 = vld [vmem:[#allocation5 + $0x48] sm:$0xff]
    %v1005 = vld [vmem:[#allocation5 + $0x50] sm:$0xff]
    %v1006 = vld [vmem:[#allocation5 + $0x58] sm:$0xff]
    %v1007 = vld [vmem:[#allocation5 + $0x60] sm:$0xff]
    %v1008 = vld [vmem:[#allocation5 + $0x68] sm:$0xff]
    %v1009 = vld [vmem:[#allocation5 + $0x70] sm:$0xff]
    %v1010 = vld [vmem:[#allocation5 + $0x78] sm:$0xff]
    %v1011 = vld [vmem:[#allocation5 + $0x80] sm:$0xff]
    %v1012 = vld [vmem:[#allocation5 + $0x88] sm:$0xff]
    %v1013 = vld [vmem:[#allocation5 + $0x90] sm:$0xff]
    %v1014 = vld [vmem:[#allocation5 + $0x98] sm:$0xff]
    %v1015 = vld [vmem:[#allocation5 + $0xa0] sm:$0xff]
    %v1016 = vld [vmem:[#allocation5 + $0xa8] sm:$0xff]
    %v1017 = vld [vmem:[#allocation5 + $0xb0] sm:$0xff]
    %v1018 = vld [vmem:[#allocation5 + $0xb8] sm:$0xff]
    %v1019 = vld [vmem:[#allocation5 + $0xc0] sm:$0xff]
    %v1020 = vld [vmem:[#allocation5 + $0xc8] sm:$0xff]
    %v1021 = vld [vmem:[#allocation5 + $0xd0] sm:$0xff]
    %v1022 = vld [vmem:[#allocation5 + $0xd8] sm:$0xff]
    %v1023 = vld [vmem:[#allocation5 + $0xe0] sm:$0xff]
    %v1024 = vld [vmem:[#allocation5 + $0xe8] sm:$0xff]
    %v1025 = vld [vmem:[#allocation5 + $0xf0] sm:$0xff]
    %v1026 = vld [vmem:[#allocation5 + $0xf8] sm:$0xff]
    %v1027 = vld [vmem:[#allocation5 + $0x100] sm:$0xff]
    %v1028 = vld [vmem:[#allocation5 + $0x108] sm:$0xff]
    %v1029 = vld [vmem:[#allocation5 + $0x110] sm:$0xff]
    %v1030 = vld [vmem:[#allocation5 + $0x118] sm:$0xff]
    %v1031 = vld [vmem:[#allocation5 + $0x120] sm:$0xff]
    %v1032 = vld [vmem:[#allocation5 + $0x128] sm:$0xff]
    %v1033 = vld [vmem:[#allocation5 + $0x130] sm:$0xff]
    %v1034 = vld [vmem:[#allocation5 + $0x138] sm:$0xff]
    %v1035 = vld [vmem:[#allocation5 + $0x140] sm:$0xff]
    %v1036 = vld [vmem:[#allocation5 + $0x148] sm:$0xff]
    %v1037 = vld [vmem:[#allocation5 + $0x150] sm:$0xff]
    %v1038 = vld [vmem:[#allocation5 + $0x158] sm:$0xff]
    %v1039 = vld [vmem:[#allocation5 + $0x160] sm:$0xff]
    %v1040 = vld [vmem:[#allocation5 + $0x168] sm:$0xff]
    %v1041 = vld [vmem:[#allocation5 + $0x170] sm:$0xff]
    %v1042 = vld [vmem:[#allocation5 + $0x178] sm:$0xff]
    %v1043 = vld [vmem:[#allocation5 + $0x180] sm:$0xff]
    %v1044 = vld [vmem:[#allocation5 + $0x188] sm:$0xff]
    %v1045 = vld [vmem:[#allocation5 + $0x190] sm:$0xff]
    %v1046 = vld [vmem:[#allocation5 + $0x198] sm:$0xff]
    %v1047 = vld [vmem:[#allocation5 + $0x1a0] sm:$0xff]
    %v1048 = vld [vmem:[#allocation5 + $0x1a8] sm:$0xff]
    %v1049 = vld [vmem:[#allocation5 + $0x1b0] sm:$0xff]
    %v1050 = vld [vmem:[#allocation5 + $0x1b8] sm:$0xff]
    %v1051 = vld [vmem:[#allocation5 + $0x1c0] sm:$0xff]
    %v1052 = vld [vmem:[#allocation5 + $0x1c8] sm:$0xff]
    %v1053 = vld [vmem:[#allocation5 + $0x1d0] sm:$0xff]
    %v1054 = vld [vmem:[#allocation5 + $0x1d8] sm:$0xff]
    %v1055 = vld [vmem:[#allocation5 + $0x1e0] sm:$0xff]
    %v1056 = vld [vmem:[#allocation5 + $0x1e8] sm:$0xff]
    %v1057 = vld [vmem:[#allocation5 + $0x1f0] sm:$0xff]
    %v1058 = vld [vmem:[#allocation5 + $0x1f8] sm:$0xff]
    %v1059 = vld [vmem:[#allocation5 + $0x200] sm:$0xff]
    %v1060 = vld [vmem:[#allocation5 + $0x208] sm:$0xff]
    %v1061 = vld [vmem:[#allocation5 + $0x210] sm:$0xff]
    %v1062 = vld [vmem:[#allocation5 + $0x218] sm:$0xff]
    %v1063 = vld [vmem:[#allocation5 + $0x220] sm:$0xff]
    %v1064 = vld [vmem:[#allocation5 + $0x228] sm:$0xff]
    %v1065 = vld [vmem:[#allocation5 + $0x230] sm:$0xff]
    %v1066 = vld [vmem:[#allocation5 + $0x238] sm:$0xff]
    %v1067 = vld [vmem:[#allocation5 + $0x240] sm:$0xff]
    %v1068 = vld [vmem:[#allocation5 + $0x248] sm:$0xff]
    %v1069 = vld [vmem:[#allocation5 + $0x250] sm:$0xff]
    %v1070 = vld [vmem:[#allocation5 + $0x258] sm:$0xff]
    %v1071 = vld [vmem:[#allocation5 + $0x260] sm:$0xff]
    %v1072 = vld [vmem:[#allocation5 + $0x268] sm:$0xff]
    %v1073 = vld [vmem:[#allocation5 + $0x270] sm:$0xff]
    %v1074 = vld [vmem:[#allocation5 + $0x278] sm:$0xff]
    %v1075 = vld [vmem:[#allocation5 + $0x280] sm:$0xff]
    %v1076 = vld [vmem:[#allocation5 + $0x288] sm:$0xff]
    %v1077 = vld [vmem:[#allocation5 + $0x290] sm:$0xff]
    %v1078 = vld [vmem:[#allocation5 + $0x298] sm:$0xff]
    %v1079 = vld [vmem:[#allocation5 + $0x2a0] sm:$0xff]
    %v1080 = vld [vmem:[#allocation5 + $0x2a8] sm:$0xff]
    %v1081 = vld [vmem:[#allocation5 + $0x2b0] sm:$0xff]
    %v1082 = vld [vmem:[#allocation5 + $0x2b8] sm:$0xff]
    %v1083 = vld [vmem:[#allocation5 + $0x2c0] sm:$0xff]
    %v1084 = vld [vmem:[#allocation5 + $0x2c8] sm:$0xff]
    %v1085 = vld [vmem:[#allocation5 + $0x2d0] sm:$0xff]
    %v1086 = vld [vmem:[#allocation5 + $0x2d8] sm:$0xff]
    %v1087 = vld [vmem:[#allocation5 + $0x2e0] sm:$0xff]
    %v1088 = vld [vmem:[#allocation5 + $0x2e8] sm:$0xff]
    %v1089 = vld [vmem:[#allocation5 + $0x2f0] sm:$0xff]
    %v1090 = vld [vmem:[#allocation5 + $0x2f8] sm:$0xff]
    %v1091 = vld [vmem:[#allocation5 + $0x300] sm:$0xff]
    %v1092 = vld [vmem:[#allocation5 + $0x308] sm:$0xff]
    %v1093 = vld [vmem:[%s6] sm:$0xf]
    %v1095 = vlaneseq
    %v1096 = vshrl.u32 %v1095, 7
    %v1097 = vsub.s32 0, %v1096
    %v1098 = vrot.slane %v1093, %v1097
    %v1099 = vlaneseq
    %v1100 = vshrl.u32 %v1099, 7
    %v1101 = vsub.s32 1, %v1100
    %v1102 = vrot.slane %v1093, %v1101
    %v1103 = vlaneseq
    %v1104 = vshrl.u32 %v1103, 7
    %v1105 = vsub.s32 2, %v1104
    %v1106 = vrot.slane %v1093, %v1105
    %v1107 = vlaneseq
    %v1108 = vshrl.u32 %v1107, 7
    %v1109 = vsub.s32 3, %v1108
    %v1110 = vrot.slane %v1093, %v1109
    %v1213 = vunpack.c.l.b16 %v995
    %v1214 = vunpack.c.h.b16 %v995
    %v1215 = vunpack.c.l.b16 %v996
    %v1216 = vunpack.c.h.b16 %v996
    %v1217 = vunpack.c.l.b16 %v997
    %v1218 = vunpack.c.h.b16 %v997
    %v1219 = vunpack.c.l.b16 %v998
    %v1220 = vunpack.c.h.b16 %v998
    %v1221 = vunpack.c.l.b16 %v999
    %v1222 = vunpack.c.h.b16 %v999
    %v1223 = vunpack.c.l.b16 %v1000
    %v1224 = vunpack.c.h.b16 %v1000
    %v1225 = vunpack.c.l.b16 %v1001
    %v1226 = vunpack.c.h.b16 %v1001
    %v1227 = vunpack.c.l.b16 %v1002
    %v1228 = vunpack.c.h.b16 %v1002
    %v1229 = vunpack.c.l.b16 %v1003
    %v1230 = vunpack.c.h.b16 %v1003
    %v1231 = vunpack.c.l.b16 %v1004
    %v1232 = vunpack.c.h.b16 %v1004
    %v1233 = vunpack.c.l.b16 %v1005
    %v1234 = vunpack.c.h.b16 %v1005
    %v1235 = vunpack.c.l.b16 %v1006
    %v1236 = vunpack.c.h.b16 %v1006
    %v1237 = vunpack.c.l.b16 %v1007
    %v1238 = vunpack.c.h.b16 %v1007
    %v1239 = vunpack.c.l.b16 %v1008
    %v1240 = vunpack.c.h.b16 %v1008
    %v1241 = vunpack.c.l.b16 %v1009
    %v1242 = vunpack.c.h.b16 %v1009
    %v1243 = vunpack.c.l.b16 %v1010
    %v1244 = vunpack.c.h.b16 %v1010
    %v1245 = vunpack.c.l.b16 %v1011
    %v1246 = vunpack.c.h.b16 %v1011
    %v1247 = vunpack.c.l.b16 %v1012
    %v1248 = vunpack.c.h.b16 %v1012
    %v1249 = vunpack.c.l.b16 %v1013
    %v1250 = vunpack.c.h.b16 %v1013
    %v1251 = vunpack.c.l.b16 %v1014
    %v1252 = vunpack.c.h.b16 %v1014
    %v1253 = vunpack.c.l.b16 %v1015
    %v1254 = vunpack.c.h.b16 %v1015
    %v1255 = vunpack.c.l.b16 %v1016
    %v1256 = vunpack.c.h.b16 %v1016
    %v1257 = vunpack.c.l.b16 %v1017
    %v1258 = vunpack.c.h.b16 %v1017
    %v1259 = vunpack.c.l.b16 %v1018
    %v1260 = vunpack.c.h.b16 %v1018
    %v1261 = vunpack.c.l.b16 %v1019
    %v1262 = vunpack.c.h.b16 %v1019
    %v1263 = vunpack.c.l.b16 %v1020
    %v1264 = vunpack.c.h.b16 %v1020
    %v1265 = vunpack.c.l.b16 %v1021
    %v1266 = vunpack.c.h.b16 %v1021
    %v1267 = vunpack.c.l.b16 %v1022
    %v1268 = vunpack.c.h.b16 %v1022
    %v1269 = vunpack.c.l.b16 %v1023
    %v1270 = vunpack.c.h.b16 %v1023
    %v1271 = vunpack.c.l.b16 %v1024
    %v1272 = vunpack.c.h.b16 %v1024
    %v1273 = vunpack.c.l.b16 %v1025
    %v1274 = vunpack.c.h.b16 %v1025
    %v1275 = vunpack.c.l.b16 %v1026
    %v1276 = vunpack.c.h.b16 %v1026
    %v1277 = vunpack.c.l.b16 %v1027
    %v1278 = vunpack.c.h.b16 %v1027
    %v1279 = vunpack.c.l.b16 %v1028
    %v1280 = vunpack.c.h.b16 %v1028
    %v1281 = vunpack.c.l.b16 %v1029
    %v1282 = vunpack.c.h.b16 %v1029
    %v1283 = vunpack.c.l.b16 %v1030
    %v1284 = vunpack.c.h.b16 %v1030
    %v1285 = vunpack.c.l.b16 %v1031
    %v1286 = vunpack.c.h.b16 %v1031
    %v1287 = vunpack.c.l.b16 %v1032
    %v1288 = vunpack.c.h.b16 %v1032
    %v1289 = vunpack.c.l.b16 %v1033
    %v1290 = vunpack.c.h.b16 %v1033
    %v1291 = vunpack.c.l.b16 %v1034
    %v1292 = vunpack.c.h.b16 %v1034
    %v1293 = vunpack.c.l.b16 %v1035
    %v1294 = vunpack.c.h.b16 %v1035
    %v1295 = vunpack.c.l.b16 %v1036
    %v1296 = vunpack.c.h.b16 %v1036
    %v1297 = vunpack.c.l.b16 %v1037
    %v1298 = vunpack.c.h.b16 %v1037
    %v1299 = vunpack.c.l.b16 %v1038
    %v1300 = vunpack.c.h.b16 %v1038
    %v1301 = vunpack.c.l.b16 %v1039
    %v1302 = vunpack.c.h.b16 %v1039
    %v1303 = vunpack.c.l.b16 %v1040
    %v1304 = vunpack.c.h.b16 %v1040
    %v1305 = vunpack.c.l.b16 %v1041
    %v1306 = vunpack.c.h.b16 %v1041
    %v1307 = vunpack.c.l.b16 %v1042
    %v1308 = vunpack.c.h.b16 %v1042
    %v1309 = vunpack.c.l.b16 %v1043
    %v1310 = vunpack.c.h.b16 %v1043
    %v1311 = vunpack.c.l.b16 %v1044
    %v1312 = vunpack.c.h.b16 %v1044
    %v1313 = vunpack.c.l.b16 %v1045
    %v1314 = vunpack.c.h.b16 %v1045
    %v1315 = vunpack.c.l.b16 %v1046
    %v1316 = vunpack.c.h.b16 %v1046
    %v1317 = vunpack.c.l.b16 %v1047
    %v1318 = vunpack.c.h.b16 %v1047
    %v1319 = vunpack.c.l.b16 %v1048
    %v1320 = vunpack.c.h.b16 %v1048
    %v1321 = vunpack.c.l.b16 %v1049
    %v1322 = vunpack.c.h.b16 %v1049
    %v1323 = vunpack.c.l.b16 %v1050
    %v1324 = vunpack.c.h.b16 %v1050
    %v1325 = vunpack.c.l.b16 %v1051
    %v1326 = vunpack.c.h.b16 %v1051
    %v1327 = vunpack.c.l.b16 %v1052
    %v1328 = vunpack.c.h.b16 %v1052
    %v1329 = vunpack.c.l.b16 %v1053
    %v1330 = vunpack.c.h.b16 %v1053
    %v1331 = vunpack.c.l.b16 %v1054
    %v1332 = vunpack.c.h.b16 %v1054
    %v1333 = vunpack.c.l.b16 %v1055
    %v1334 = vunpack.c.h.b16 %v1055
    %v1335 = vunpack.c.l.b16 %v1056
    %v1336 = vunpack.c.h.b16 %v1056
    %v1337 = vunpack.c.l.b16 %v1057
    %v1338 = vunpack.c.h.b16 %v1057
    %v1339 = vunpack.c.l.b16 %v1058
    %v1340 = vunpack.c.h.b16 %v1058
    %v1341 = vunpack.c.l.b16 %v1059
    %v1342 = vunpack.c.h.b16 %v1059
    %v1343 = vunpack.c.l.b16 %v1060
    %v1344 = vunpack.c.h.b16 %v1060
    %v1345 = vunpack.c.l.b16 %v1061
    %v1346 = vunpack.c.h.b16 %v1061
    %v1347 = vunpack.c.l.b16 %v1062
    %v1348 = vunpack.c.h.b16 %v1062
    %v1349 = vunpack.c.l.b16 %v1063
    %v1350 = vunpack.c.h.b16 %v1063
    %v1351 = vunpack.c.l.b16 %v1064
    %v1352 = vunpack.c.h.b16 %v1064
    %v1353 = vunpack.c.l.b16 %v1065
    %v1354 = vunpack.c.h.b16 %v1065
    %v1355 = vunpack.c.l.b16 %v1066
    %v1356 = vunpack.c.h.b16 %v1066
    %v1357 = vunpack.c.l.b16 %v1067
    %v1358 = vunpack.c.h.b16 %v1067
    %v1359 = vunpack.c.l.b16 %v1068
    %v1360 = vunpack.c.h.b16 %v1068
    %v1361 = vunpack.c.l.b16 %v1069
    %v1362 = vunpack.c.h.b16 %v1069
    %v1363 = vunpack.c.l.b16 %v1070
    %v1364 = vunpack.c.h.b16 %v1070
    %v1365 = vunpack.c.l.b16 %v1071
    %v1366 = vunpack.c.h.b16 %v1071
    %v1367 = vunpack.c.l.b16 %v1072
    %v1368 = vunpack.c.h.b16 %v1072
    %v1369 = vunpack.c.l.b16 %v1073
    %v1370 = vunpack.c.h.b16 %v1073
    %v1371 = vunpack.c.l.b16 %v1074
    %v1372 = vunpack.c.h.b16 %v1074
    %v1373 = vunpack.c.l.b16 %v1075
    %v1374 = vunpack.c.h.b16 %v1075
    %v1375 = vunpack.c.l.b16 %v1076
    %v1376 = vunpack.c.h.b16 %v1076
    %v1377 = vunpack.c.l.b16 %v1077
    %v1378 = vunpack.c.h.b16 %v1077
    %v1379 = vunpack.c.l.b16 %v1078
    %v1380 = vunpack.c.h.b16 %v1078
    %v1381 = vunpack.c.l.b16 %v1079
    %v1382 = vunpack.c.h.b16 %v1079
    %v1383 = vunpack.c.l.b16 %v1080
    %v1384 = vunpack.c.h.b16 %v1080
    %v1385 = vunpack.c.l.b16 %v1081
    %v1386 = vunpack.c.h.b16 %v1081
    %v1387 = vunpack.c.l.b16 %v1082
    %v1388 = vunpack.c.h.b16 %v1082
    %v1389 = vunpack.c.l.b16 %v1083
    %v1390 = vunpack.c.h.b16 %v1083
    %v1391 = vunpack.c.l.b16 %v1084
    %v1392 = vunpack.c.h.b16 %v1084
    %v1393 = vunpack.c.l.b16 %v1085
    %v1394 = vunpack.c.h.b16 %v1085
    %v1395 = vunpack.c.l.b16 %v1086
    %v1396 = vunpack.c.h.b16 %v1086
    %v1397 = vunpack.c.l.b16 %v1087
    %v1398 = vunpack.c.h.b16 %v1087
    %v1399 = vunpack.c.l.b16 %v1088
    %v1400 = vunpack.c.h.b16 %v1088
    %v1401 = vunpack.c.l.b16 %v1089
    %v1402 = vunpack.c.h.b16 %v1089
    %v1403 = vunpack.c.l.b16 %v1090
    %v1404 = vunpack.c.h.b16 %v1090
    %v1405 = vunpack.c.l.b16 %v1091
    %v1406 = vunpack.c.h.b16 %v1091
    %v1407 = vunpack.c.l.b16 %v1092
    %v1408 = vunpack.c.h.b16 %v1092
    %v1409 = vpack.c.b16 %v1217, %v1213
    %v1410 = vpack.c.b16 %v1218, %v1214
    %v1411 = vpack.c.b16 %v1219, %v1215
    %v1412 = vpack.c.b16 %v1220, %v1216
    %v1413 = vpack.c.b16 %v1225, %v1221
    %v1414 = vpack.c.b16 %v1226, %v1222
    %v1415 = vpack.c.b16 %v1227, %v1223
    %v1416 = vpack.c.b16 %v1228, %v1224
    %v1417 = vpack.c.b16 %v1233, %v1229
    %v1418 = vpack.c.b16 %v1234, %v1230
    %v1419 = vpack.c.b16 %v1235, %v1231
    %v1420 = vpack.c.b16 %v1236, %v1232
    %v1421 = vpack.c.b16 %v1241, %v1237
    %v1422 = vpack.c.b16 %v1242, %v1238
    %v1423 = vpack.c.b16 %v1243, %v1239
    %v1424 = vpack.c.b16 %v1244, %v1240
    %v1425 = vpack.c.b16 %v1249, %v1245
    %v1426 = vpack.c.b16 %v1250, %v1246
    %v1427 = vpack.c.b16 %v1251, %v1247
    %v1428 = vpack.c.b16 %v1252, %v1248
    %v1429 = vpack.c.b16 %v1257, %v1253
    %v1430 = vpack.c.b16 %v1258, %v1254
    %v1431 = vpack.c.b16 %v1259, %v1255
    %v1432 = vpack.c.b16 %v1260, %v1256
    %v1433 = vpack.c.b16 %v1265, %v1261
    %v1434 = vpack.c.b16 %v1266, %v1262
    %v1435 = vpack.c.b16 %v1267, %v1263
    %v1436 = vpack.c.b16 %v1268, %v1264
    %v1437 = vpack.c.b16 %v1273, %v1269
    %v1438 = vpack.c.b16 %v1274, %v1270
    %v1439 = vpack.c.b16 %v1275, %v1271
    %v1440 = vpack.c.b16 %v1276, %v1272
    %v1441 = vpack.c.b16 %v1281, %v1277
    %v1442 = vpack.c.b16 %v1282, %v1278
    %v1443 = vpack.c.b16 %v1283, %v1279
    %v1444 = vpack.c.b16 %v1284, %v1280
    %v1445 = vpack.c.b16 %v1289, %v1285
    %v1446 = vpack.c.b16 %v1290, %v1286
    %v1447 = vpack.c.b16 %v1291, %v1287
    %v1448 = vpack.c.b16 %v1292, %v1288
    %v1449 = vpack.c.b16 %v1297, %v1293
    %v1450 = vpack.c.b16 %v1298, %v1294
    %v1451 = vpack.c.b16 %v1299, %v1295
    %v1452 = vpack.c.b16 %v1300, %v1296
    %v1453 = vpack.c.b16 %v1305, %v1301
    %v1454 = vpack.c.b16 %v1306, %v1302
    %v1455 = vpack.c.b16 %v1307, %v1303
    %v1456 = vpack.c.b16 %v1308, %v1304
    %v1457 = vpack.c.b16 %v1313, %v1309
    %v1458 = vpack.c.b16 %v1314, %v1310
    %v1459 = vpack.c.b16 %v1315, %v1311
    %v1460 = vpack.c.b16 %v1316, %v1312
    %v1461 = vpack.c.b16 %v1321, %v1317
    %v1462 = vpack.c.b16 %v1322, %v1318
    %v1463 = vpack.c.b16 %v1323, %v1319
    %v1464 = vpack.c.b16 %v1324, %v1320
    %v1465 = vpack.c.b16 %v1329, %v1325
    %v1466 = vpack.c.b16 %v1330, %v1326
    %v1467 = vpack.c.b16 %v1331, %v1327
    %v1468 = vpack.c.b16 %v1332, %v1328
    %v1469 = vpack.c.b16 %v1337, %v1333
    %v1470 = vpack.c.b16 %v1338, %v1334
    %v1471 = vpack.c.b16 %v1339, %v1335
    %v1472 = vpack.c.b16 %v1340, %v1336
    %v1473 = vpack.c.b16 %v1345, %v1341
    %v1474 = vpack.c.b16 %v1346, %v1342
    %v1475 = vpack.c.b16 %v1347, %v1343
    %v1476 = vpack.c.b16 %v1348, %v1344
    %v1477 = vpack.c.b16 %v1353, %v1349
    %v1478 = vpack.c.b16 %v1354, %v1350
    %v1479 = vpack.c.b16 %v1355, %v1351
    %v1480 = vpack.c.b16 %v1356, %v1352
    %v1481 = vpack.c.b16 %v1361, %v1357
    %v1482 = vpack.c.b16 %v1362, %v1358
    %v1483 = vpack.c.b16 %v1363, %v1359
    %v1484 = vpack.c.b16 %v1364, %v1360
    %v1485 = vpack.c.b16 %v1369, %v1365
    %v1486 = vpack.c.b16 %v1370, %v1366
    %v1487 = vpack.c.b16 %v1371, %v1367
    %v1488 = vpack.c.b16 %v1372, %v1368
    %v1489 = vpack.c.b16 %v1377, %v1373
    %v1490 = vpack.c.b16 %v1378, %v1374
    %v1491 = vpack.c.b16 %v1379, %v1375
    %v1492 = vpack.c.b16 %v1380, %v1376
    %v1493 = vpack.c.b16 %v1385, %v1381
    %v1494 = vpack.c.b16 %v1386, %v1382
    %v1495 = vpack.c.b16 %v1387, %v1383
    %v1496 = vpack.c.b16 %v1388, %v1384
    %v1497 = vpack.c.b16 %v1393, %v1389
    %v1498 = vpack.c.b16 %v1394, %v1390
    %v1499 = vpack.c.b16 %v1395, %v1391
    %v1500 = vpack.c.b16 %v1396, %v1392
    %v1501 = vpack.c.b16 %v1401, %v1397
    %v1502 = vpack.c.b16 %v1402, %v1398
    %v1503 = vpack.c.b16 %v1403, %v1399
    %v1504 = vpack.c.b16 %v1404, %v1400
    %v1505 = vpack.c.b16 %v1405, %v1405
    %v1506 = vpack.c.b16 %v1406, %v1406
    %v1507 = vpack.c.b16 %v1407, %v1407
    %v1508 = vpack.c.b16 %v1408, %v1408
    %v1606 = vsel %vm806, %v994, 0
    %v1609 = vsel %vm810, %v1505, 0
    %v1612 = vsel %vm810, %v1506, 0
    %v1615 = vsel %vm810, %v1507, 0
    %v1618 = vsel %vm810, %v1508, 0
    %1620 = vmatprep.subr.bf16.mxu0 %v1410
    %1621 = vmatpush1.bf16.msra.mxu0 %v1409
    %1622 = vmatprep.subr.bf16.mxu0 %v1414
    %1623 = vmatpush1.bf16.msra.mxu0 %v1413
    %1624 = vmatprep.subr.bf16.mxu0 %v1418
    %1625 = vmatpush1.bf16.msra.mxu0 %v1417
    %1626 = vmatprep.subr.bf16.mxu0 %v1422
    %1627 = vmatpush1.bf16.msra.mxu0 %v1421
    %1628 = vmatprep.subr.bf16.mxu0 %v1426
    %1629 = vmatpush1.bf16.msra.mxu0 %v1425
    %1630 = vmatprep.subr.bf16.mxu0 %v1430
    %1631 = vmatpush1.bf16.msra.mxu0 %v1429
    %1632 = vmatprep.subr.bf16.mxu0 %v1434
    %1633 = vmatpush1.bf16.msra.mxu0 %v1433
    %1634 = vmatprep.subr.bf16.mxu0 %v1438
    %1635 = vmatpush1.bf16.msra.mxu0 %v1437
    %1636 = vmatprep.subr.bf16.mxu0 %v1442
    %1637 = vmatpush1.bf16.msra.mxu0 %v1441
    %1638 = vmatprep.subr.bf16.mxu0 %v1446
    %1639 = vmatpush1.bf16.msra.mxu0 %v1445
    %1640 = vmatprep.subr.bf16.mxu0 %v1450
    %1641 = vmatpush1.bf16.msra.mxu0 %v1449
    %1642 = vmatprep.subr.bf16.mxu0 %v1454
    %1643 = vmatpush1.bf16.msra.mxu0 %v1453
    %1644 = vmatprep.subr.bf16.mxu0 %v1458
    %1645 = vmatpush1.bf16.msra.mxu0 %v1457
    %1646 = vmatprep.subr.bf16.mxu0 %v1462
    %1647 = vmatpush1.bf16.msra.mxu0 %v1461
    %1648 = vmatprep.subr.bf16.mxu0 %v1466
    %1649 = vmatpush1.bf16.msra.mxu0 %v1465
    %1650 = vmatprep.subr.bf16.mxu0 %v1470
    %1651 = vmatpush1.bf16.msra.mxu0 %v1469
    %1652 = vmatprep.mubr.bf16.mxu0 %v992
    %1653 = vmatmul.mubr.bf16.gmra.mrb[0].mxu0 %v991
    %v1654 = vpop.f32.mrb[0].mxu0
    %v1655 = vadd.f32 %v1098, %v1654
    %v1656 = vpop.f32.mrb[0].mxu0
    %v1657 = vadd.f32 %v1102, %v1656
    %v1658 = vpop.f32.mrb[0].mxu0
    %v1659 = vpop.f32.mrb[0].mxu0
    %1660 = vdwg.mxu0
    %1661 = vmatprep.subr.bf16.mxu0 %v1474
    %1662 = vmatpush1.bf16.msra.mxu0 %v1473
    %1663 = vmatprep.subr.bf16.mxu0 %v1478
    %1664 = vmatpush1.bf16.msra.mxu0 %v1477
    %1665 = vmatprep.subr.bf16.mxu0 %v1482
    %1666 = vmatpush1.bf16.msra.mxu0 %v1481
    %1667 = vmatprep.subr.bf16.mxu0 %v1486
    %1668 = vmatpush1.bf16.msra.mxu0 %v1485
    %1669 = vmatprep.subr.bf16.mxu0 %v1490
    %1670 = vmatpush1.bf16.msra.mxu0 %v1489
    %1671 = vmatprep.subr.bf16.mxu0 %v1494
    %1672 = vmatpush1.bf16.msra.mxu0 %v1493
    %1673 = vmatprep.subr.bf16.mxu0 %v1498
    %1674 = vmatpush1.bf16.msra.mxu0 %v1497
    %1675 = vmatprep.subr.bf16.mxu0 %v1502
    %1676 = vmatpush1.bf16.msra.mxu0 %v1501
    %1677 = vmatprep.subr.bf16.mxu0 %v1612
    %1678 = vmatpush1.bf16.msra.mxu0 %v1609
    %1679 = vmatprep.subr.bf16.mxu0 0
    %1680 = vmatpush1.bf16.msra.mxu0 0
    %1681 = vmatprep.subr.bf16.mxu0 0
    %1682 = vmatpush1.bf16.msra.mxu0 0
    %1683 = vmatprep.subr.bf16.mxu0 0
    %1684 = vmatpush1.bf16.msra.mxu0 0
    %1685 = vmatprep.subr.bf16.mxu0 0
    %1686 = vmatpush1.bf16.msra.mxu0 0
    %1687 = vmatprep.subr.bf16.mxu0 0
    %1688 = vmatpush1.bf16.msra.mxu0 0
    %1689 = vmatprep.subr.bf16.mxu0 0
    %1690 = vmatpush1.bf16.msra.mxu0 0
    %1691 = vmatprep.subr.bf16.mxu0 0
    %1692 = vmatpush1.bf16.msra.mxu0 0
    %1693 = vmatprep.mubr.bf16.mxu0 %v1606
    %1694 = vmatmul.mubr.bf16.gmra.mrb[0].mxu0 %v993
    %v1695 = vpop.f32.mrb[0].mxu0
    %v1696 = vadd.f32 %v1655, %v1695
    %v1697 = vpop.f32.mrb[0].mxu0
    %v1698 = vadd.f32 %v1657, %v1697
    %v1699 = vpop.f32.mrb[0].mxu0
    %v1700 = vpop.f32.mrb[0].mxu0
    %1701 = vdwg.mxu0
    %1702 = vmatprep.subr.bf16.mxu0 %v1412
    %1703 = vmatpush1.bf16.msra.mxu0 %v1411
    %1704 = vmatprep.subr.bf16.mxu0 %v1416
    %1705 = vmatpush1.bf16.msra.mxu0 %v1415
    %1706 = vmatprep.subr.bf16.mxu0 %v1420
    %1707 = vmatpush1.bf16.msra.mxu0 %v1419
    %1708 = vmatprep.subr.bf16.mxu0 %v1424
    %1709 = vmatpush1.bf16.msra.mxu0 %v1423
    %1710 = vmatprep.subr.bf16.mxu0 %v1428
    %1711 = vmatpush1.bf16.msra.mxu0 %v1427
    %1712 = vmatprep.subr.bf16.mxu0 %v1432
    %1713 = vmatpush1.bf16.msra.mxu0 %v1431
    %1714 = vmatprep.subr.bf16.mxu0 %v1436
    %1715 = vmatpush1.bf16.msra.mxu0 %v1435
    %1716 = vmatprep.subr.bf16.mxu0 %v1440
    %1717 = vmatpush1.bf16.msra.mxu0 %v1439
    %1718 = vmatprep.subr.bf16.mxu0 %v1444
    %1719 = vmatpush1.bf16.msra.mxu0 %v1443
    %1720 = vmatprep.subr.bf16.mxu0 %v1448
    %1721 = vmatpush1.bf16.msra.mxu0 %v1447
    %1722 = vmatprep.subr.bf16.mxu0 %v1452
    %1723 = vmatpush1.bf16.msra.mxu0 %v1451
    %1724 = vmatprep.subr.bf16.mxu0 %v1456
    %1725 = vmatpush1.bf16.msra.mxu0 %v1455
    %1726 = vmatprep.subr.bf16.mxu0 %v1460
    %1727 = vmatpush1.bf16.msra.mxu0 %v1459
    %1728 = vmatprep.subr.bf16.mxu0 %v1464
    %1729 = vmatpush1.bf16.msra.mxu0 %v1463
    %1730 = vmatprep.subr.bf16.mxu0 %v1468
    %1731 = vmatpush1.bf16.msra.mxu0 %v1467
    %1732 = vmatprep.subr.bf16.mxu0 %v1472
    %1733 = vmatpush1.bf16.msra.mxu0 %v1471
    %1734 = vmatprep.mubr.bf16.mxu0 %v992
    %1735 = vmatmul.mubr.bf16.gmra.mrb[0].mxu0 %v991
    %v1736 = vpop.f32.mrb[0].mxu0
    %v1737 = vadd.f32 %v1106, %v1736
    %v1738 = vpop.f32.mrb[0].mxu0
    %v1739 = vadd.f32 %v1110, %v1738
    %v1740 = vpop.f32.mrb[0].mxu0
    %v1741 = vpop.f32.mrb[0].mxu0
    %1742 = vdwg.mxu0
    %1743 = vmatprep.subr.bf16.mxu0 %v1476
    %1744 = vmatpush1.bf16.msra.mxu0 %v1475
    %1745 = vmatprep.subr.bf16.mxu0 %v1480
    %1746 = vmatpush1.bf16.msra.mxu0 %v1479
    %1747 = vmatprep.subr.bf16.mxu0 %v1484
    %1748 = vmatpush1.bf16.msra.mxu0 %v1483
    %1749 = vmatprep.subr.bf16.mxu0 %v1488
    %1750 = vmatpush1.bf16.msra.mxu0 %v1487
    %1751 = vmatprep.subr.bf16.mxu0 %v1492
    %1752 = vmatpush1.bf16.msra.mxu0 %v1491
    %1753 = vmatprep.subr.bf16.mxu0 %v1496
    %1754 = vmatpush1.bf16.msra.mxu0 %v1495
    %1755 = vmatprep.subr.bf16.mxu0 %v1500
    %1756 = vmatpush1.bf16.msra.mxu0 %v1499
    %1757 = vmatprep.subr.bf16.mxu0 %v1504
    %1758 = vmatpush1.bf16.msra.mxu0 %v1503
    %1759 = vmatprep.subr.bf16.mxu0 %v1618
    %1760 = vmatpush1.bf16.msra.mxu0 %v1615
    %1761 = vmatprep.subr.bf16.mxu0 0
    %1762 = vmatpush1.bf16.msra.mxu0 0
    %1763 = vmatprep.subr.bf16.mxu0 0
    %1764 = vmatpush1.bf16.msra.mxu0 0
    %1765 = vmatprep.subr.bf16.mxu0 0
    %1766 = vmatpush1.bf16.msra.mxu0 0
    %1767 = vmatprep.subr.bf16.mxu0 0
    %1768 = vmatpush1.bf16.msra.mxu0 0
    %1769 = vmatprep.subr.bf16.mxu0 0
    %1770 = vmatpush1.bf16.msra.mxu0 0
    %1771 = vmatprep.subr.bf16.mxu0 0
    %1772 = vmatpush1.bf16.msra.mxu0 0
    %1773 = vmatprep.subr.bf16.mxu0 0
    %1774 = vmatpush1.bf16.msra.mxu0 0
    %1775 = vmatprep.mubr.bf16.mxu0 %v1606
    %1776 = vmatmul.mubr.bf16.gmra.mrb[0].mxu0 %v993
    %v1777 = vpop.f32.mrb[0].mxu0
    %v1778 = vadd.f32 %v1737, %v1777
    %v1779 = vpop.f32.mrb[0].mxu0
    %v1780 = vadd.f32 %v1739, %v1779
    %v1781 = vpop.f32.mrb[0].mxu0
    %v1782 = vpop.f32.mrb[0].mxu0
    %1783 = vdwg.mxu0
    %v1784 = vmax.f32 %v1696, 0.0
    %v1785 = vmax.f32 %v1698, 0.0
    %v1786 = vmax.f32 %v1778, 0.0
    %v1787 = vmax.f32 %v1780, 0.0
    %v1788 = vpack.c.bf16 %v1784, %v1784
    %v1789 = vpack.c.bf16 %v1785, %v1785
    %v1790 = vpack.c.bf16 %v1786, %v1786
    %v1791 = vpack.c.bf16 %v1787, %v1787
    %v1792 = vld [vmem:[#allocation7] sm:$0xff]
    %v1793 = vld [vmem:[#allocation7 + $0x8] sm:$0xff]
    %v1794 = vld [vmem:[#allocation7 + $0x10] sm:$0xff]
    %v1795 = vld [vmem:[#allocation7 + $0x18] sm:$0xff]
    %v1796 = vld [vmem:[#allocation7 + $0x20] sm:$0xff]
    %v1797 = vld [vmem:[#allocation7 + $0x28] sm:$0xff]
    %v1798 = vld [vmem:[#allocation7 + $0x30] sm:$0xff]
    %v1799 = vld [vmem:[#allocation7 + $0x38] sm:$0xff]
    %v1800 = vld [vmem:[#allocation7 + $0x40] sm:$0xff]
    %v1801 = vld [vmem:[#allocation7 + $0x48] sm:$0xff]
    %v1802 = vld [vmem:[#allocation7 + $0x50] sm:$0xff]
    %v1803 = vld [vmem:[#allocation7 + $0x58] sm:$0xff]
    %v1804 = vld [vmem:[#allocation7 + $0x60] sm:$0xff]
    %v1805 = vld [vmem:[#allocation7 + $0x68] sm:$0xff]
    %v1806 = vld [vmem:[#allocation7 + $0x70] sm:$0xff]
    %v1807 = vld [vmem:[#allocation7 + $0x78] sm:$0xff]
    %v1808 = vld [vmem:[#allocation7 + $0x80] sm:$0xff]
    %v1809 = vld [vmem:[#allocation7 + $0x88] sm:$0xff]
    %v1810 = vld [vmem:[#allocation7 + $0x90] sm:$0xff]
    %v1811 = vld [vmem:[#allocation7 + $0x98] sm:$0xff]
    %v1812 = vld [vmem:[#allocation7 + $0xa0] sm:$0xff]
    %v1813 = vld [vmem:[#allocation7 + $0xa8] sm:$0xff]
    %v1814 = vld [vmem:[#allocation7 + $0xb0] sm:$0xff]
    %v1815 = vld [vmem:[#allocation7 + $0xb8] sm:$0xff]
    %v1816 = vld [vmem:[#allocation7 + $0xc0] sm:$0xff]
    %v1817 = vld [vmem:[#allocation7 + $0xc8] sm:$0xff]
    %v1818 = vld [vmem:[#allocation7 + $0xd0] sm:$0xff]
    %v1819 = vld [vmem:[#allocation7 + $0xd8] sm:$0xff]
    %v1820 = vld [vmem:[#allocation7 + $0xe0] sm:$0xff]
    %v1821 = vld [vmem:[#allocation7 + $0xe8] sm:$0xff]
    %v1822 = vld [vmem:[#allocation7 + $0xf0] sm:$0xff]
    %v1823 = vld [vmem:[#allocation7 + $0xf8] sm:$0xff]
    %v1824 = vld [vmem:[#allocation7 + $0x100] sm:$0xff]
    %v1825 = vld [vmem:[#allocation7 + $0x108] sm:$0xff]
    %v1826 = vld [vmem:[#allocation7 + $0x110] sm:$0xff]
    %v1827 = vld [vmem:[#allocation7 + $0x118] sm:$0xff]
    %v1828 = vld [vmem:[#allocation7 + $0x120] sm:$0xff]
    %v1829 = vld [vmem:[#allocation7 + $0x128] sm:$0xff]
    %v1830 = vld [vmem:[#allocation7 + $0x130] sm:$0xff]
    %v1831 = vld [vmem:[#allocation7 + $0x138] sm:$0xff]
    %v1832 = vld [vmem:[#allocation7 + $0x140] sm:$0xff]
    %v1833 = vld [vmem:[#allocation7 + $0x148] sm:$0xff]
    %v1834 = vld [vmem:[#allocation7 + $0x150] sm:$0xff]
    %v1835 = vld [vmem:[#allocation7 + $0x158] sm:$0xff]
    %v1836 = vld [vmem:[#allocation7 + $0x160] sm:$0xff]
    %v1837 = vld [vmem:[#allocation7 + $0x168] sm:$0xff]
    %v1838 = vld [vmem:[#allocation7 + $0x170] sm:$0xff]
    %v1839 = vld [vmem:[#allocation7 + $0x178] sm:$0xff]
    %v1840 = vld [vmem:[#allocation7 + $0x180] sm:$0xff]
    %v1841 = vld [vmem:[#allocation7 + $0x188] sm:$0xff]
    %v1842 = vld [vmem:[#allocation7 + $0x190] sm:$0xff]
    %v1843 = vld [vmem:[#allocation7 + $0x198] sm:$0xff]
    %v1844 = vld [vmem:[#allocation7 + $0x1a0] sm:$0xff]
    %v1845 = vld [vmem:[#allocation7 + $0x1a8] sm:$0xff]
    %v1846 = vld [vmem:[#allocation7 + $0x1b0] sm:$0xff]
    %v1847 = vld [vmem:[#allocation7 + $0x1b8] sm:$0xff]
    %v1848 = vld [vmem:[#allocation7 + $0x1c0] sm:$0xff]
    %v1849 = vld [vmem:[#allocation7 + $0x1c8] sm:$0xff]
    %v1850 = vld [vmem:[#allocation7 + $0x1d0] sm:$0xff]
    %v1851 = vld [vmem:[#allocation7 + $0x1d8] sm:$0xff]
    %v1852 = vld [vmem:[#allocation7 + $0x1e0] sm:$0xff]
    %v1853 = vld [vmem:[#allocation7 + $0x1e8] sm:$0xff]
    %v1854 = vld [vmem:[#allocation7 + $0x1f0] sm:$0xff]
    %v1855 = vld [vmem:[#allocation7 + $0x1f8] sm:$0xff]
    %v1856 = vld [vmem:[#allocation7 + $0x200] sm:$0xff]
    %v1857 = vld [vmem:[#allocation7 + $0x208] sm:$0xff]
    %v1858 = vld [vmem:[#allocation7 + $0x210] sm:$0xff]
    %v1859 = vld [vmem:[#allocation7 + $0x218] sm:$0xff]
    %v1860 = vld [vmem:[#allocation7 + $0x220] sm:$0xff]
    %v1861 = vld [vmem:[#allocation7 + $0x228] sm:$0xff]
    %v1862 = vld [vmem:[#allocation7 + $0x230] sm:$0xff]
    %v1863 = vld [vmem:[#allocation7 + $0x238] sm:$0xff]
    %v1864 = vld [vmem:[#allocation7 + $0x240] sm:$0xff]
    %v1865 = vld [vmem:[#allocation7 + $0x248] sm:$0xff]
    %v1866 = vld [vmem:[#allocation7 + $0x250] sm:$0xff]
    %v1867 = vld [vmem:[#allocation7 + $0x258] sm:$0xff]
    %v1868 = vld [vmem:[#allocation7 + $0x260] sm:$0xff]
    %v1869 = vld [vmem:[#allocation7 + $0x268] sm:$0xff]
    %v1870 = vld [vmem:[#allocation7 + $0x270] sm:$0xff]
    %v1871 = vld [vmem:[#allocation7 + $0x278] sm:$0xff]
    %v1872 = vld [vmem:[#allocation7 + $0x280] sm:$0xff]
    %v1873 = vld [vmem:[#allocation7 + $0x288] sm:$0xff]
    %v1874 = vld [vmem:[#allocation7 + $0x290] sm:$0xff]
    %v1875 = vld [vmem:[#allocation7 + $0x298] sm:$0xff]
    %v1876 = vld [vmem:[#allocation7 + $0x2a0] sm:$0xff]
    %v1877 = vld [vmem:[#allocation7 + $0x2a8] sm:$0xff]
    %v1878 = vld [vmem:[#allocation7 + $0x2b0] sm:$0xff]
    %v1879 = vld [vmem:[#allocation7 + $0x2b8] sm:$0xff]
    %v1880 = vld [vmem:[#allocation7 + $0x2c0] sm:$0xff]
    %v1881 = vld [vmem:[#allocation7 + $0x2c8] sm:$0xff]
    %v1882 = vld [vmem:[#allocation7 + $0x2d0] sm:$0xff]
    %v1883 = vld [vmem:[#allocation7 + $0x2d8] sm:$0xff]
    %v1884 = vld [vmem:[#allocation7 + $0x2e0] sm:$0xff]
    %v1885 = vld [vmem:[#allocation7 + $0x2e8] sm:$0xff]
    %v1886 = vld [vmem:[#allocation7 + $0x2f0] sm:$0xff]
    %v1887 = vld [vmem:[#allocation7 + $0x2f8] sm:$0xff]
    %v1888 = vld [vmem:[#allocation7 + $0x300] sm:$0xff]
    %v1889 = vld [vmem:[#allocation7 + $0x308] sm:$0xff]
    %v1890 = vld [vmem:[%s8] sm:$0xf]
    %v1892 = vlaneseq
    %v1893 = vshrl.u32 %v1892, 7
    %v1894 = vsub.s32 0, %v1893
    %v1895 = vrot.slane %v1890, %v1894
    %v1896 = vlaneseq
    %v1897 = vshrl.u32 %v1896, 7
    %v1898 = vsub.s32 1, %v1897
    %v1899 = vrot.slane %v1890, %v1898
    %v1900 = vlaneseq
    %v1901 = vshrl.u32 %v1900, 7
    %v1902 = vsub.s32 2, %v1901
    %v1903 = vrot.slane %v1890, %v1902
    %v1904 = vlaneseq
    %v1905 = vshrl.u32 %v1904, 7
    %v1906 = vsub.s32 3, %v1905
    %v1907 = vrot.slane %v1890, %v1906
    %v2010 = vunpack.c.l.b16 %v1792
    %v2011 = vunpack.c.h.b16 %v1792
    %v2012 = vunpack.c.l.b16 %v1793
    %v2013 = vunpack.c.h.b16 %v1793
    %v2014 = vunpack.c.l.b16 %v1794
    %v2015 = vunpack.c.h.b16 %v1794
    %v2016 = vunpack.c.l.b16 %v1795
    %v2017 = vunpack.c.h.b16 %v1795
    %v2018 = vunpack.c.l.b16 %v1796
    %v2019 = vunpack.c.h.b16 %v1796
    %v2020 = vunpack.c.l.b16 %v1797
    %v2021 = vunpack.c.h.b16 %v1797
    %v2022 = vunpack.c.l.b16 %v1798
    %v2023 = vunpack.c.h.b16 %v1798
    %v2024 = vunpack.c.l.b16 %v1799
    %v2025 = vunpack.c.h.b16 %v1799
    %v2026 = vunpack.c.l.b16 %v1800
    %v2027 = vunpack.c.h.b16 %v1800
    %v2028 = vunpack.c.l.b16 %v1801
    %v2029 = vunpack.c.h.b16 %v1801
    %v2030 = vunpack.c.l.b16 %v1802
    %v2031 = vunpack.c.h.b16 %v1802
    %v2032 = vunpack.c.l.b16 %v1803
    %v2033 = vunpack.c.h.b16 %v1803
    %v2034 = vunpack.c.l.b16 %v1804
    %v2035 = vunpack.c.h.b16 %v1804
    %v2036 = vunpack.c.l.b16 %v1805
    %v2037 = vunpack.c.h.b16 %v1805
    %v2038 = vunpack.c.l.b16 %v1806
    %v2039 = vunpack.c.h.b16 %v1806
    %v2040 = vunpack.c.l.b16 %v1807
    %v2041 = vunpack.c.h.b16 %v1807
    %v2042 = vunpack.c.l.b16 %v1808
    %v2043 = vunpack.c.h.b16 %v1808
    %v2044 = vunpack.c.l.b16 %v1809
    %v2045 = vunpack.c.h.b16 %v1809
    %v2046 = vunpack.c.l.b16 %v1810
    %v2047 = vunpack.c.h.b16 %v1810
    %v2048 = vunpack.c.l.b16 %v1811
    %v2049 = vunpack.c.h.b16 %v1811
    %v2050 = vunpack.c.l.b16 %v1812
    %v2051 = vunpack.c.h.b16 %v1812
    %v2052 = vunpack.c.l.b16 %v1813
    %v2053 = vunpack.c.h.b16 %v1813
    %v2054 = vunpack.c.l.b16 %v1814
    %v2055 = vunpack.c.h.b16 %v1814
    %v2056 = vunpack.c.l.b16 %v1815
    %v2057 = vunpack.c.h.b16 %v1815
    %v2058 = vunpack.c.l.b16 %v1816
    %v2059 = vunpack.c.h.b16 %v1816
    %v2060 = vunpack.c.l.b16 %v1817
    %v2061 = vunpack.c.h.b16 %v1817
    %v2062 = vunpack.c.l.b16 %v1818
    %v2063 = vunpack.c.h.b16 %v1818
    %v2064 = vunpack.c.l.b16 %v1819
    %v2065 = vunpack.c.h.b16 %v1819
    %v2066 = vunpack.c.l.b16 %v1820
    %v2067 = vunpack.c.h.b16 %v1820
    %v2068 = vunpack.c.l.b16 %v1821
    %v2069 = vunpack.c.h.b16 %v1821
    %v2070 = vunpack.c.l.b16 %v1822
    %v2071 = vunpack.c.h.b16 %v1822
    %v2072 = vunpack.c.l.b16 %v1823
    %v2073 = vunpack.c.h.b16 %v1823
    %v2074 = vunpack.c.l.b16 %v1824
    %v2075 = vunpack.c.h.b16 %v1824
    %v2076 = vunpack.c.l.b16 %v1825
    %v2077 = vunpack.c.h.b16 %v1825
    %v2078 = vunpack.c.l.b16 %v1826
    %v2079 = vunpack.c.h.b16 %v1826
    %v2080 = vunpack.c.l.b16 %v1827
    %v2081 = vunpack.c.h.b16 %v1827
    %v2082 = vunpack.c.l.b16 %v1828
    %v2083 = vunpack.c.h.b16 %v1828
    %v2084 = vunpack.c.l.b16 %v1829
    %v2085 = vunpack.c.h.b16 %v1829
    %v2086 = vunpack.c.l.b16 %v1830
    %v2087 = vunpack.c.h.b16 %v1830
    %v2088 = vunpack.c.l.b16 %v1831
    %v2089 = vunpack.c.h.b16 %v1831
    %v2090 = vunpack.c.l.b16 %v1832
    %v2091 = vunpack.c.h.b16 %v1832
    %v2092 = vunpack.c.l.b16 %v1833
    %v2093 = vunpack.c.h.b16 %v1833
    %v2094 = vunpack.c.l.b16 %v1834
    %v2095 = vunpack.c.h.b16 %v1834
    %v2096 = vunpack.c.l.b16 %v1835
    %v2097 = vunpack.c.h.b16 %v1835
    %v2098 = vunpack.c.l.b16 %v1836
    %v2099 = vunpack.c.h.b16 %v1836
    %v2100 = vunpack.c.l.b16 %v1837
    %v2101 = vunpack.c.h.b16 %v1837
    %v2102 = vunpack.c.l.b16 %v1838
    %v2103 = vunpack.c.h.b16 %v1838
    %v2104 = vunpack.c.l.b16 %v1839
    %v2105 = vunpack.c.h.b16 %v1839
    %v2106 = vunpack.c.l.b16 %v1840
    %v2107 = vunpack.c.h.b16 %v1840
    %v2108 = vunpack.c.l.b16 %v1841
    %v2109 = vunpack.c.h.b16 %v1841
    %v2110 = vunpack.c.l.b16 %v1842
    %v2111 = vunpack.c.h.b16 %v1842
    %v2112 = vunpack.c.l.b16 %v1843
    %v2113 = vunpack.c.h.b16 %v1843
    %v2114 = vunpack.c.l.b16 %v1844
    %v2115 = vunpack.c.h.b16 %v1844
    %v2116 = vunpack.c.l.b16 %v1845
    %v2117 = vunpack.c.h.b16 %v1845
    %v2118 = vunpack.c.l.b16 %v1846
    %v2119 = vunpack.c.h.b16 %v1846
    %v2120 = vunpack.c.l.b16 %v1847
    %v2121 = vunpack.c.h.b16 %v1847
    %v2122 = vunpack.c.l.b16 %v1848
    %v2123 = vunpack.c.h.b16 %v1848
    %v2124 = vunpack.c.l.b16 %v1849
    %v2125 = vunpack.c.h.b16 %v1849
    %v2126 = vunpack.c.l.b16 %v1850
    %v2127 = vunpack.c.h.b16 %v1850
    %v2128 = vunpack.c.l.b16 %v1851
    %v2129 = vunpack.c.h.b16 %v1851
    %v2130 = vunpack.c.l.b16 %v1852
    %v2131 = vunpack.c.h.b16 %v1852
    %v2132 = vunpack.c.l.b16 %v1853
    %v2133 = vunpack.c.h.b16 %v1853
    %v2134 = vunpack.c.l.b16 %v1854
    %v2135 = vunpack.c.h.b16 %v1854
    %v2136 = vunpack.c.l.b16 %v1855
    %v2137 = vunpack.c.h.b16 %v1855
    %v2138 = vunpack.c.l.b16 %v1856
    %v2139 = vunpack.c.h.b16 %v1856
    %v2140 = vunpack.c.l.b16 %v1857
    %v2141 = vunpack.c.h.b16 %v1857
    %v2142 = vunpack.c.l.b16 %v1858
    %v2143 = vunpack.c.h.b16 %v1858
    %v2144 = vunpack.c.l.b16 %v1859
    %v2145 = vunpack.c.h.b16 %v1859
    %v2146 = vunpack.c.l.b16 %v1860
    %v2147 = vunpack.c.h.b16 %v1860
    %v2148 = vunpack.c.l.b16 %v1861
    %v2149 = vunpack.c.h.b16 %v1861
    %v2150 = vunpack.c.l.b16 %v1862
    %v2151 = vunpack.c.h.b16 %v1862
    %v2152 = vunpack.c.l.b16 %v1863
    %v2153 = vunpack.c.h.b16 %v1863
    %v2154 = vunpack.c.l.b16 %v1864
    %v2155 = vunpack.c.h.b16 %v1864
    %v2156 = vunpack.c.l.b16 %v1865
    %v2157 = vunpack.c.h.b16 %v1865
    %v2158 = vunpack.c.l.b16 %v1866
    %v2159 = vunpack.c.h.b16 %v1866
    %v2160 = vunpack.c.l.b16 %v1867
    %v2161 = vunpack.c.h.b16 %v1867
    %v2162 = vunpack.c.l.b16 %v1868
    %v2163 = vunpack.c.h.b16 %v1868
    %v2164 = vunpack.c.l.b16 %v1869
    %v2165 = vunpack.c.h.b16 %v1869
    %v2166 = vunpack.c.l.b16 %v1870
    %v2167 = vunpack.c.h.b16 %v1870
    %v2168 = vunpack.c.l.b16 %v1871
    %v2169 = vunpack.c.h.b16 %v1871
    %v2170 = vunpack.c.l.b16 %v1872
    %v2171 = vunpack.c.h.b16 %v1872
    %v2172 = vunpack.c.l.b16 %v1873
    %v2173 = vunpack.c.h.b16 %v1873
    %v2174 = vunpack.c.l.b16 %v1874
    %v2175 = vunpack.c.h.b16 %v1874
    %v2176 = vunpack.c.l.b16 %v1875
    %v2177 = vunpack.c.h.b16 %v1875
    %v2178 = vunpack.c.l.b16 %v1876
    %v2179 = vunpack.c.h.b16 %v1876
    %v2180 = vunpack.c.l.b16 %v1877
    %v2181 = vunpack.c.h.b16 %v1877
    %v2182 = vunpack.c.l.b16 %v1878
    %v2183 = vunpack.c.h.b16 %v1878
    %v2184 = vunpack.c.l.b16 %v1879
    %v2185 = vunpack.c.h.b16 %v1879
    %v2186 = vunpack.c.l.b16 %v1880
    %v2187 = vunpack.c.h.b16 %v1880
    %v2188 = vunpack.c.l.b16 %v1881
    %v2189 = vunpack.c.h.b16 %v1881
    %v2190 = vunpack.c.l.b16 %v1882
    %v2191 = vunpack.c.h.b16 %v1882
    %v2192 = vunpack.c.l.b16 %v1883
    %v2193 = vunpack.c.h.b16 %v1883
    %v2194 = vunpack.c.l.b16 %v1884
    %v2195 = vunpack.c.h.b16 %v1884
    %v2196 = vunpack.c.l.b16 %v1885
    %v2197 = vunpack.c.h.b16 %v1885
    %v2198 = vunpack.c.l.b16 %v1886
    %v2199 = vunpack.c.h.b16 %v1886
    %v2200 = vunpack.c.l.b16 %v1887
    %v2201 = vunpack.c.h.b16 %v1887
    %v2202 = vunpack.c.l.b16 %v1888
    %v2203 = vunpack.c.h.b16 %v1888
    %v2204 = vunpack.c.l.b16 %v1889
    %v2205 = vunpack.c.h.b16 %v1889
    %v2206 = vpack.c.b16 %v2014, %v2010
    %v2207 = vpack.c.b16 %v2015, %v2011
    %v2208 = vpack.c.b16 %v2016, %v2012
    %v2209 = vpack.c.b16 %v2017, %v2013
    %v2210 = vpack.c.b16 %v2022, %v2018
    %v2211 = vpack.c.b16 %v2023, %v2019
    %v2212 = vpack.c.b16 %v2024, %v2020
    %v2213 = vpack.c.b16 %v2025, %v2021
    %v2214 = vpack.c.b16 %v2030, %v2026
    %v2215 = vpack.c.b16 %v2031, %v2027
    %v2216 = vpack.c.b16 %v2032, %v2028
    %v2217 = vpack.c.b16 %v2033, %v2029
    %v2218 = vpack.c.b16 %v2038, %v2034
    %v2219 = vpack.c.b16 %v2039, %v2035
    %v2220 = vpack.c.b16 %v2040, %v2036
    %v2221 = vpack.c.b16 %v2041, %v2037
    %v2222 = vpack.c.b16 %v2046, %v2042
    %v2223 = vpack.c.b16 %v2047, %v2043
    %v2224 = vpack.c.b16 %v2048, %v2044
    %v2225 = vpack.c.b16 %v2049, %v2045
    %v2226 = vpack.c.b16 %v2054, %v2050
    %v2227 = vpack.c.b16 %v2055, %v2051
    %v2228 = vpack.c.b16 %v2056, %v2052
    %v2229 = vpack.c.b16 %v2057, %v2053
    %v2230 = vpack.c.b16 %v2062, %v2058
    %v2231 = vpack.c.b16 %v2063, %v2059
    %v2232 = vpack.c.b16 %v2064, %v2060
    %v2233 = vpack.c.b16 %v2065, %v2061
    %v2234 = vpack.c.b16 %v2070, %v2066
    %v2235 = vpack.c.b16 %v2071, %v2067
    %v2236 = vpack.c.b16 %v2072, %v2068
    %v2237 = vpack.c.b16 %v2073, %v2069
    %v2238 = vpack.c.b16 %v2078, %v2074
    %v2239 = vpack.c.b16 %v2079, %v2075
    %v2240 = vpack.c.b16 %v2080, %v2076
    %v2241 = vpack.c.b16 %v2081, %v2077
    %v2242 = vpack.c.b16 %v2086, %v2082
    %v2243 = vpack.c.b16 %v2087, %v2083
    %v2244 = vpack.c.b16 %v2088, %v2084
    %v2245 = vpack.c.b16 %v2089, %v2085
    %v2246 = vpack.c.b16 %v2094, %v2090
    %v2247 = vpack.c.b16 %v2095, %v2091
    %v2248 = vpack.c.b16 %v2096, %v2092
    %v2249 = vpack.c.b16 %v2097, %v2093
    %v2250 = vpack.c.b16 %v2102, %v2098
    %v2251 = vpack.c.b16 %v2103, %v2099
    %v2252 = vpack.c.b16 %v2104, %v2100
    %v2253 = vpack.c.b16 %v2105, %v2101
    %v2254 = vpack.c.b16 %v2110, %v2106
    %v2255 = vpack.c.b16 %v2111, %v2107
    %v2256 = vpack.c.b16 %v2112, %v2108
    %v2257 = vpack.c.b16 %v2113, %v2109
    %v2258 = vpack.c.b16 %v2118, %v2114
    %v2259 = vpack.c.b16 %v2119, %v2115
    %v2260 = vpack.c.b16 %v2120, %v2116
    %v2261 = vpack.c.b16 %v2121, %v2117
    %v2262 = vpack.c.b16 %v2126, %v2122
    %v2263 = vpack.c.b16 %v2127, %v2123
    %v2264 = vpack.c.b16 %v2128, %v2124
    %v2265 = vpack.c.b16 %v2129, %v2125
    %v2266 = vpack.c.b16 %v2134, %v2130
    %v2267 = vpack.c.b16 %v2135, %v2131
    %v2268 = vpack.c.b16 %v2136, %v2132
    %v2269 = vpack.c.b16 %v2137, %v2133
    %v2270 = vpack.c.b16 %v2142, %v2138
    %v2271 = vpack.c.b16 %v2143, %v2139
    %v2272 = vpack.c.b16 %v2144, %v2140
    %v2273 = vpack.c.b16 %v2145, %v2141
    %v2274 = vpack.c.b16 %v2150, %v2146
    %v2275 = vpack.c.b16 %v2151, %v2147
    %v2276 = vpack.c.b16 %v2152, %v2148
    %v2277 = vpack.c.b16 %v2153, %v2149
    %v2278 = vpack.c.b16 %v2158, %v2154
    %v2279 = vpack.c.b16 %v2159, %v2155
    %v2280 = vpack.c.b16 %v2160, %v2156
    %v2281 = vpack.c.b16 %v2161, %v2157
    %v2282 = vpack.c.b16 %v2166, %v2162
    %v2283 = vpack.c.b16 %v2167, %v2163
    %v2284 = vpack.c.b16 %v2168, %v2164
    %v2285 = vpack.c.b16 %v2169, %v2165
    %v2286 = vpack.c.b16 %v2174, %v2170
    %v2287 = vpack.c.b16 %v2175, %v2171
    %v2288 = vpack.c.b16 %v2176, %v2172
    %v2289 = vpack.c.b16 %v2177, %v2173
    %v2290 = vpack.c.b16 %v2182, %v2178
    %v2291 = vpack.c.b16 %v2183, %v2179
    %v2292 = vpack.c.b16 %v2184, %v2180
    %v2293 = vpack.c.b16 %v2185, %v2181
    %v2294 = vpack.c.b16 %v2190, %v2186
    %v2295 = vpack.c.b16 %v2191, %v2187
    %v2296 = vpack.c.b16 %v2192, %v2188
    %v2297 = vpack.c.b16 %v2193, %v2189
    %v2298 = vpack.c.b16 %v2198, %v2194
    %v2299 = vpack.c.b16 %v2199, %v2195
    %v2300 = vpack.c.b16 %v2200, %v2196
    %v2301 = vpack.c.b16 %v2201, %v2197
    %v2302 = vpack.c.b16 %v2202, %v2202
    %v2303 = vpack.c.b16 %v2203, %v2203
    %v2304 = vpack.c.b16 %v2204, %v2204
    %v2305 = vpack.c.b16 %v2205, %v2205
    %v2403 = vsel %vm806, %v1791, 0
    %v2406 = vsel %vm810, %v2302, 0
    %v2409 = vsel %vm810, %v2303, 0
    %v2412 = vsel %vm810, %v2304, 0
    %v2415 = vsel %vm810, %v2305, 0
    %2417 = vmatprep.subr.bf16.mxu0 %v2207
    %2418 = vmatpush1.bf16.msra.mxu0 %v2206
    %2419 = vmatprep.subr.bf16.mxu0 %v2211
    %2420 = vmatpush1.bf16.msra.mxu0 %v2210
    %2421 = vmatprep.subr.bf16.mxu0 %v2215
    %2422 = vmatpush1.bf16.msra.mxu0 %v2214
    %2423 = vmatprep.subr.bf16.mxu0 %v2219
    %2424 = vmatpush1.bf16.msra.mxu0 %v2218
    %2425 = vmatprep.subr.bf16.mxu0 %v2223
    %2426 = vmatpush1.bf16.msra.mxu0 %v2222
    %2427 = vmatprep.subr.bf16.mxu0 %v2227
    %2428 = vmatpush1.bf16.msra.mxu0 %v2226
    %2429 = vmatprep.subr.bf16.mxu0 %v2231
    %2430 = vmatpush1.bf16.msra.mxu0 %v2230
    %2431 = vmatprep.subr.bf16.mxu0 %v2235
    %2432 = vmatpush1.bf16.msra.mxu0 %v2234
    %2433 = vmatprep.subr.bf16.mxu0 %v2239
    %2434 = vmatpush1.bf16.msra.mxu0 %v2238
    %2435 = vmatprep.subr.bf16.mxu0 %v2243
    %2436 = vmatpush1.bf16.msra.mxu0 %v2242
    %2437 = vmatprep.subr.bf16.mxu0 %v2247
    %2438 = vmatpush1.bf16.msra.mxu0 %v2246
    %2439 = vmatprep.subr.bf16.mxu0 %v2251
    %2440 = vmatpush1.bf16.msra.mxu0 %v2250
    %2441 = vmatprep.subr.bf16.mxu0 %v2255
    %2442 = vmatpush1.bf16.msra.mxu0 %v2254
    %2443 = vmatprep.subr.bf16.mxu0 %v2259
    %2444 = vmatpush1.bf16.msra.mxu0 %v2258
    %2445 = vmatprep.subr.bf16.mxu0 %v2263
    %2446 = vmatpush1.bf16.msra.mxu0 %v2262
    %2447 = vmatprep.subr.bf16.mxu0 %v2267
    %2448 = vmatpush1.bf16.msra.mxu0 %v2266
    %2449 = vmatprep.mubr.bf16.mxu0 %v1789
    %2450 = vmatmul.mubr.bf16.gmra.mrb[0].mxu0 %v1788
    %v2451 = vpop.f32.mrb[0].mxu0
    %v2452 = vadd.f32 %v1895, %v2451
    %v2453 = vpop.f32.mrb[0].mxu0
    %v2454 = vadd.f32 %v1899, %v2453
    %v2455 = vpop.f32.mrb[0].mxu0
    %v2456 = vpop.f32.mrb[0].mxu0
    %2457 = vdwg.mxu0
    %2458 = vmatprep.subr.bf16.mxu0 %v2271
    %2459 = vmatpush1.bf16.msra.mxu0 %v2270
    %2460 = vmatprep.subr.bf16.mxu0 %v2275
    %2461 = vmatpush1.bf16.msra.mxu0 %v2274
    %2462 = vmatprep.subr.bf16.mxu0 %v2279
    %2463 = vmatpush1.bf16.msra.mxu0 %v2278
    %2464 = vmatprep.subr.bf16.mxu0 %v2283
    %2465 = vmatpush1.bf16.msra.mxu0 %v2282
    %2466 = vmatprep.subr.bf16.mxu0 %v2287
    %2467 = vmatpush1.bf16.msra.mxu0 %v2286
    %2468 = vmatprep.subr.bf16.mxu0 %v2291
    %2469 = vmatpush1.bf16.msra.mxu0 %v2290
    %2470 = vmatprep.subr.bf16.mxu0 %v2295
    %2471 = vmatpush1.bf16.msra.mxu0 %v2294
    %2472 = vmatprep.subr.bf16.mxu0 %v2299
    %2473 = vmatpush1.bf16.msra.mxu0 %v2298
    %2474 = vmatprep.subr.bf16.mxu0 %v2409
    %2475 = vmatpush1.bf16.msra.mxu0 %v2406
    %2476 = vmatprep.subr.bf16.mxu0 0
    %2477 = vmatpush1.bf16.msra.mxu0 0
    %2478 = vmatprep.subr.bf16.mxu0 0
    %2479 = vmatpush1.bf16.msra.mxu0 0
    %2480 = vmatprep.subr.bf16.mxu0 0
    %2481 = vmatpush1.bf16.msra.mxu0 0
    %2482 = vmatprep.subr.bf16.mxu0 0
    %2483 = vmatpush1.bf16.msra.mxu0 0
    %2484 = vmatprep.subr.bf16.mxu0 0
    %2485 = vmatpush1.bf16.msra.mxu0 0
    %2486 = vmatprep.subr.bf16.mxu0 0
    %2487 = vmatpush1.bf16.msra.mxu0 0
    %2488 = vmatprep.subr.bf16.mxu0 0
    %2489 = vmatpush1.bf16.msra.mxu0 0
    %2490 = vmatprep.mubr.bf16.mxu0 %v2403
    %2491 = vmatmul.mubr.bf16.gmra.mrb[0].mxu0 %v1790
    %v2492 = vpop.f32.mrb[0].mxu0
    %v2493 = vadd.f32 %v2452, %v2492
    %v2494 = vpop.f32.mrb[0].mxu0
    %v2495 = vadd.f32 %v2454, %v2494
    %v2496 = vpop.f32.mrb[0].mxu0
    %v2497 = vpop.f32.mrb[0].mxu0
    %2498 = vdwg.mxu0
    %2499 = vmatprep.subr.bf16.mxu0 %v2209
    %2500 = vmatpush1.bf16.msra.mxu0 %v2208
    %2501 = vmatprep.subr.bf16.mxu0 %v2213
    %2502 = vmatpush1.bf16.msra.mxu0 %v2212
    %2503 = vmatprep.subr.bf16.mxu0 %v2217
    %2504 = vmatpush1.bf16.msra.mxu0 %v2216
    %2505 = vmatprep.subr.bf16.mxu0 %v2221
    %2506 = vmatpush1.bf16.msra.mxu0 %v2220
    %2507 = vmatprep.subr.bf16.mxu0 %v2225
    %2508 = vmatpush1.bf16.msra.mxu0 %v2224
    %2509 = vmatprep.subr.bf16.mxu0 %v2229
    %2510 = vmatpush1.bf16.msra.mxu0 %v2228
    %2511 = vmatprep.subr.bf16.mxu0 %v2233
    %2512 = vmatpush1.bf16.msra.mxu0 %v2232
    %2513 = vmatprep.subr.bf16.mxu0 %v2237
    %2514 = vmatpush1.bf16.msra.mxu0 %v2236
    %2515 = vmatprep.subr.bf16.mxu0 %v2241
    %2516 = vmatpush1.bf16.msra.mxu0 %v2240
    %2517 = vmatprep.subr.bf16.mxu0 %v2245
    %2518 = vmatpush1.bf16.msra.mxu0 %v2244
    %2519 = vmatprep.subr.bf16.mxu0 %v2249
    %2520 = vmatpush1.bf16.msra.mxu0 %v2248
    %2521 = vmatprep.subr.bf16.mxu0 %v2253
    %2522 = vmatpush1.bf16.msra.mxu0 %v2252
    %2523 = vmatprep.subr.bf16.mxu0 %v2257
    %2524 = vmatpush1.bf16.msra.mxu0 %v2256
    %2525 = vmatprep.subr.bf16.mxu0 %v2261
    %2526 = vmatpush1.bf16.msra.mxu0 %v2260
    %2527 = vmatprep.subr.bf16.mxu0 %v2265
    %2528 = vmatpush1.bf16.msra.mxu0 %v2264
    %2529 = vmatprep.subr.bf16.mxu0 %v2269
    %2530 = vmatpush1.bf16.msra.mxu0 %v2268
    %2531 = vmatprep.mubr.bf16.mxu0 %v1789
    %2532 = vmatmul.mubr.bf16.gmra.mrb[0].mxu0 %v1788
    %v2533 = vpop.f32.mrb[0].mxu0
    %v2534 = vadd.f32 %v1903, %v2533
    %v2535 = vpop.f32.mrb[0].mxu0
    %v2536 = vadd.f32 %v1907, %v2535
    %v2537 = vpop.f32.mrb[0].mxu0
    %v2538 = vpop.f32.mrb[0].mxu0
    %2539 = vdwg.mxu0
    %2540 = vmatprep.subr.bf16.mxu0 %v2273
    %2541 = vmatpush1.bf16.msra.mxu0 %v2272
    %2542 = vmatprep.subr.bf16.mxu0 %v2277
    %2543 = vmatpush1.bf16.msra.mxu0 %v2276
    %2544 = vmatprep.subr.bf16.mxu0 %v2281
    %2545 = vmatpush1.bf16.msra.mxu0 %v2280
    %2546 = vmatprep.subr.bf16.mxu0 %v2285
    %2547 = vmatpush1.bf16.msra.mxu0 %v2284
    %2548 = vmatprep.subr.bf16.mxu0 %v2289
    %2549 = vmatpush1.bf16.msra.mxu0 %v2288
    %2550 = vmatprep.subr.bf16.mxu0 %v2293
    %2551 = vmatpush1.bf16.msra.mxu0 %v2292
    %2552 = vmatprep.subr.bf16.mxu0 %v2297
    %2553 = vmatpush1.bf16.msra.mxu0 %v2296
    %2554 = vmatprep.subr.bf16.mxu0 %v2301
    %2555 = vmatpush1.bf16.msra.mxu0 %v2300
    %2556 = vmatprep.subr.bf16.mxu0 %v2415
    %2557 = vmatpush1.bf16.msra.mxu0 %v2412
    %2558 = vmatprep.subr.bf16.mxu0 0
    %2559 = vmatpush1.bf16.msra.mxu0 0
    %2560 = vmatprep.subr.bf16.mxu0 0
    %2561 = vmatpush1.bf16.msra.mxu0 0
    %2562 = vmatprep.subr.bf16.mxu0 0
    %2563 = vmatpush1.bf16.msra.mxu0 0
    %2564 = vmatprep.subr.bf16.mxu0 0
    %2565 = vmatpush1.bf16.msra.mxu0 0
    %2566 = vmatprep.subr.bf16.mxu0 0
    %2567 = vmatpush1.bf16.msra.mxu0 0
    %2568 = vmatprep.subr.bf16.mxu0 0
    %2569 = vmatpush1.bf16.msra.mxu0 0
    %2570 = vmatprep.subr.bf16.mxu0 0
    %2571 = vmatpush1.bf16.msra.mxu0 0
    %2572 = vmatprep.mubr.bf16.mxu0 %v2403
    %2573 = vmatmul.mubr.bf16.gmra.mrb[0].mxu0 %v1790
    %v2574 = vpop.f32.mrb[0].mxu0
    %v2575 = vadd.f32 %v2534, %v2574
    %v2576 = vpop.f32.mrb[0].mxu0
    %v2577 = vadd.f32 %v2536, %v2576
    %v2578 = vpop.f32.mrb[0].mxu0
    %v2579 = vpop.f32.mrb[0].mxu0
    %2580 = vdwg.mxu0
    %v2581 = vmax.f32 %v2493, 0.0
    %v2582 = vmax.f32 %v2495, 0.0
    %v2583 = vmax.f32 %v2575, 0.0
    %v2584 = vmax.f32 %v2577, 0.0
    %v2585 = vpack.c.bf16 %v2581, %v2581
    %v2586 = vpack.c.bf16 %v2582, %v2582
    %v2587 = vpack.c.bf16 %v2583, %v2583
    %v2588 = vpack.c.bf16 %v2584, %v2584
    %v2589 = vld [vmem:[#allocation8] sm:$0xf]
    %v2590 = vld [vmem:[#allocation8 + $0x4] sm:$0xf]
    %v2591 = vld [vmem:[#allocation8 + $0x8] sm:$0xf]
    %v2592 = vld [vmem:[#allocation8 + $0xc] sm:$0xf]
    %v2593 = vld [vmem:[#allocation8 + $0x10] sm:$0xf]
    %v2594 = vld [vmem:[#allocation8 + $0x14] sm:$0xf]
    %v2595 = vld [vmem:[#allocation8 + $0x18] sm:$0xf]
    %v2596 = vld [vmem:[#allocation8 + $0x1c] sm:$0xf]
    %v2597 = vld [vmem:[#allocation8 + $0x20] sm:$0xf]
    %v2598 = vld [vmem:[#allocation8 + $0x24] sm:$0xf]
    %v2599 = vld [vmem:[#allocation8 + $0x28] sm:$0xf]
    %v2600 = vld [vmem:[#allocation8 + $0x2c] sm:$0xf]
    %v2601 = vld [vmem:[#allocation8 + $0x30] sm:$0xf]
    %v2602 = vld [vmem:[#allocation8 + $0x34] sm:$0xf]
    %v2603 = vld [vmem:[#allocation8 + $0x38] sm:$0xf]
    %v2604 = vld [vmem:[#allocation8 + $0x3c] sm:$0xf]
    %v2605 = vld [vmem:[#allocation8 + $0x40] sm:$0xf]
    %v2606 = vld [vmem:[#allocation8 + $0x44] sm:$0xf]
    %v2607 = vld [vmem:[#allocation8 + $0x48] sm:$0xf]
    %v2608 = vld [vmem:[#allocation8 + $0x4c] sm:$0xf]
    %v2609 = vld [vmem:[#allocation8 + $0x50] sm:$0xf]
    %v2610 = vld [vmem:[#allocation8 + $0x54] sm:$0xf]
    %v2611 = vld [vmem:[#allocation8 + $0x58] sm:$0xf]
    %v2612 = vld [vmem:[#allocation8 + $0x5c] sm:$0xf]
    %v2613 = vld [vmem:[#allocation8 + $0x60] sm:$0xf]
    %v2614 = vld [vmem:[#allocation8 + $0x64] sm:$0xf]
    %v2615 = vld [vmem:[#allocation8 + $0x68] sm:$0xf]
    %v2616 = vld [vmem:[#allocation8 + $0x6c] sm:$0xf]
    %v2617 = vld [vmem:[#allocation8 + $0x70] sm:$0xf]
    %v2618 = vld [vmem:[#allocation8 + $0x74] sm:$0xf]
    %v2619 = vld [vmem:[#allocation8 + $0x78] sm:$0xf]
    %v2620 = vld [vmem:[#allocation8 + $0x7c] sm:$0xf]
    %v2621 = vld [vmem:[#allocation8 + $0x80] sm:$0xf]
    %v2622 = vld [vmem:[#allocation8 + $0x84] sm:$0xf]
    %v2623 = vld [vmem:[#allocation8 + $0x88] sm:$0xf]
    %v2624 = vld [vmem:[#allocation8 + $0x8c] sm:$0xf]
    %v2625 = vld [vmem:[#allocation8 + $0x90] sm:$0xf]
    %v2626 = vld [vmem:[#allocation8 + $0x94] sm:$0xf]
    %v2627 = vld [vmem:[#allocation8 + $0x98] sm:$0xf]
    %v2628 = vld [vmem:[#allocation8 + $0x9c] sm:$0xf]
    %v2629 = vld [vmem:[#allocation8 + $0xa0] sm:$0xf]
    %v2630 = vld [vmem:[#allocation8 + $0xa4] sm:$0xf]
    %v2631 = vld [vmem:[#allocation8 + $0xa8] sm:$0xf]
    %v2632 = vld [vmem:[#allocation8 + $0xac] sm:$0xf]
    %v2633 = vld [vmem:[#allocation8 + $0xb0] sm:$0xf]
    %v2634 = vld [vmem:[#allocation8 + $0xb4] sm:$0xf]
    %v2635 = vld [vmem:[#allocation8 + $0xb8] sm:$0xf]
    %v2636 = vld [vmem:[#allocation8 + $0xbc] sm:$0xf]
    %v2637 = vld [vmem:[#allocation8 + $0xc0] sm:$0xf]
    %v2638 = vld [vmem:[%s10] sm:$0x1]
    %v2640 = vlaneseq
    %v2641 = vshrl.u32 %v2640, 7
    %v2642 = vsub.s32 0, %v2641
    %v2643 = vrot.slane %v2638, %v2642
    %v2694 = vunpack.c.l.b16 %v2589
    %v2695 = vunpack.c.l.b16 %v2590
    %v2696 = vunpack.c.l.b16 %v2591
    %v2697 = vunpack.c.l.b16 %v2592
    %v2698 = vunpack.c.l.b16 %v2593
    %v2699 = vunpack.c.l.b16 %v2594
    %v2700 = vunpack.c.l.b16 %v2595
    %v2701 = vunpack.c.l.b16 %v2596
    %v2702 = vunpack.c.l.b16 %v2597
    %v2703 = vunpack.c.l.b16 %v2598
    %v2704 = vunpack.c.l.b16 %v2599
    %v2705 = vunpack.c.l.b16 %v2600
    %v2706 = vunpack.c.l.b16 %v2601
    %v2707 = vunpack.c.l.b16 %v2602
    %v2708 = vunpack.c.l.b16 %v2603
    %v2709 = vunpack.c.l.b16 %v2604
    %v2710 = vunpack.c.l.b16 %v2605
    %v2711 = vunpack.c.l.b16 %v2606
    %v2712 = vunpack.c.l.b16 %v2607
    %v2713 = vunpack.c.l.b16 %v2608
    %v2714 = vunpack.c.l.b16 %v2609
    %v2715 = vunpack.c.l.b16 %v2610
    %v2716 = vunpack.c.l.b16 %v2611
    %v2717 = vunpack.c.l.b16 %v2612
    %v2718 = vunpack.c.l.b16 %v2613
    %v2719 = vunpack.c.l.b16 %v2614
    %v2720 = vunpack.c.l.b16 %v2615
    %v2721 = vunpack.c.l.b16 %v2616
    %v2722 = vunpack.c.l.b16 %v2617
    %v2723 = vunpack.c.l.b16 %v2618
    %v2724 = vunpack.c.l.b16 %v2619
    %v2725 = vunpack.c.l.b16 %v2620
    %v2726 = vunpack.c.l.b16 %v2621
    %v2727 = vunpack.c.l.b16 %v2622
    %v2728 = vunpack.c.l.b16 %v2623
    %v2729 = vunpack.c.l.b16 %v2624
    %v2730 = vunpack.c.l.b16 %v2625
    %v2731 = vunpack.c.l.b16 %v2626
    %v2732 = vunpack.c.l.b16 %v2627
    %v2733 = vunpack.c.l.b16 %v2628
    %v2734 = vunpack.c.l.b16 %v2629
    %v2735 = vunpack.c.l.b16 %v2630
    %v2736 = vunpack.c.l.b16 %v2631
    %v2737 = vunpack.c.l.b16 %v2632
    %v2738 = vunpack.c.l.b16 %v2633
    %v2739 = vunpack.c.l.b16 %v2634
    %v2740 = vunpack.c.l.b16 %v2635
    %v2741 = vunpack.c.l.b16 %v2636
    %v2742 = vunpack.c.l.b16 %v2637
    %v2743 = vpack.c.b16 %v2695, %v2694
    %v2744 = vpack.c.b16 %v2697, %v2696
    %v2745 = vpack.c.b16 %v2699, %v2698
    %v2746 = vpack.c.b16 %v2701, %v2700
    %v2747 = vpack.c.b16 %v2703, %v2702
    %v2748 = vpack.c.b16 %v2705, %v2704
    %v2749 = vpack.c.b16 %v2707, %v2706
    %v2750 = vpack.c.b16 %v2709, %v2708
    %v2751 = vpack.c.b16 %v2711, %v2710
    %v2752 = vpack.c.b16 %v2713, %v2712
    %v2753 = vpack.c.b16 %v2715, %v2714
    %v2754 = vpack.c.b16 %v2717, %v2716
    %v2755 = vpack.c.b16 %v2719, %v2718
    %v2756 = vpack.c.b16 %v2721, %v2720
    %v2757 = vpack.c.b16 %v2723, %v2722
    %v2758 = vpack.c.b16 %v2725, %v2724
    %v2759 = vpack.c.b16 %v2727, %v2726
    %v2760 = vpack.c.b16 %v2729, %v2728
    %v2761 = vpack.c.b16 %v2731, %v2730
    %v2762 = vpack.c.b16 %v2733, %v2732
    %v2763 = vpack.c.b16 %v2735, %v2734
    %v2764 = vpack.c.b16 %v2737, %v2736
    %v2765 = vpack.c.b16 %v2739, %v2738
    %v2766 = vpack.c.b16 %v2741, %v2740
    %v2767 = vpack.c.b16 %v2742, %v2742
    %v2793 = vsel %vm806, %v2588, 0
    %v2796 = vsel %vm810, %v2767, 0
    %2798 = vmatprep.subr.bf16.mxu0 0
    %2799 = vmatpush1.bf16.msra.mxu0 %v2743
    %2800 = vmatprep.subr.bf16.mxu0 0
    %2801 = vmatpush1.bf16.msra.mxu0 %v2744
    %2802 = vmatprep.subr.bf16.mxu0 0
    %2803 = vmatpush1.bf16.msra.mxu0 %v2745
    %2804 = vmatprep.subr.bf16.mxu0 0
    %2805 = vmatpush1.bf16.msra.mxu0 %v2746
    %2806 = vmatprep.subr.bf16.mxu0 0
    %2807 = vmatpush1.bf16.msra.mxu0 %v2747
    %2808 = vmatprep.subr.bf16.mxu0 0
    %2809 = vmatpush1.bf16.msra.mxu0 %v2748
    %2810 = vmatprep.subr.bf16.mxu0 0
    %2811 = vmatpush1.bf16.msra.mxu0 %v2749
    %2812 = vmatprep.subr.bf16.mxu0 0
    %2813 = vmatpush1.bf16.msra.mxu0 %v2750
    %2814 = vmatprep.subr.bf16.mxu0 0
    %2815 = vmatpush1.bf16.msra.mxu0 %v2751
    %2816 = vmatprep.subr.bf16.mxu0 0
    %2817 = vmatpush1.bf16.msra.mxu0 %v2752
    %2818 = vmatprep.subr.bf16.mxu0 0
    %2819 = vmatpush1.bf16.msra.mxu0 %v2753
    %2820 = vmatprep.subr.bf16.mxu0 0
    %2821 = vmatpush1.bf16.msra.mxu0 %v2754
    %2822 = vmatprep.subr.bf16.mxu0 0
    %2823 = vmatpush1.bf16.msra.mxu0 %v2755
    %2824 = vmatprep.subr.bf16.mxu0 0
    %2825 = vmatpush1.bf16.msra.mxu0 %v2756
    %2826 = vmatprep.subr.bf16.mxu0 0
    %2827 = vmatpush1.bf16.msra.mxu0 %v2757
    %2828 = vmatprep.subr.bf16.mxu0 0
    %2829 = vmatpush1.bf16.msra.mxu0 %v2758
    %2830 = vmatprep.mubr.bf16.mxu0 %v2586
    %2831 = vmatmul.mubr.bf16.gmra.mrb[0].mxu0 %v2585
    %v2832 = vpop.f32.mrb[0].mxu0
    %v2833 = vadd.f32 %v2643, %v2832
    %v2834 = vpop.f32.mrb[0].mxu0
    %v2835 = vpop.f32.mrb[0].mxu0
    %v2836 = vpop.f32.mrb[0].mxu0
    %2837 = vdwg.mxu0
    %2838 = vmatprep.subr.bf16.mxu0 0
    %2839 = vmatpush1.bf16.msra.mxu0 %v2759
    %2840 = vmatprep.subr.bf16.mxu0 0
    %2841 = vmatpush1.bf16.msra.mxu0 %v2760
    %2842 = vmatprep.subr.bf16.mxu0 0
    %2843 = vmatpush1.bf16.msra.mxu0 %v2761
    %2844 = vmatprep.subr.bf16.mxu0 0
    %2845 = vmatpush1.bf16.msra.mxu0 %v2762
    %2846 = vmatprep.subr.bf16.mxu0 0
    %2847 = vmatpush1.bf16.msra.mxu0 %v2763
    %2848 = vmatprep.subr.bf16.mxu0 0
    %2849 = vmatpush1.bf16.msra.mxu0 %v2764
    %2850 = vmatprep.subr.bf16.mxu0 0
    %2851 = vmatpush1.bf16.msra.mxu0 %v2765
    %2852 = vmatprep.subr.bf16.mxu0 0
    %2853 = vmatpush1.bf16.msra.mxu0 %v2766
    %2854 = vmatprep.subr.bf16.mxu0 0
    %2855 = vmatpush1.bf16.msra.mxu0 %v2796
    %2856 = vmatprep.subr.bf16.mxu0 0
    %2857 = vmatpush1.bf16.msra.mxu0 0
    %2858 = vmatprep.subr.bf16.mxu0 0
    %2859 = vmatpush1.bf16.msra.mxu0 0
    %2860 = vmatprep.subr.bf16.mxu0 0
    %2861 = vmatpush1.bf16.msra.mxu0 0
    %2862 = vmatprep.subr.bf16.mxu0 0
    %2863 = vmatpush1.bf16.msra.mxu0 0
    %2864 = vmatprep.subr.bf16.mxu0 0
    %2865 = vmatpush1.bf16.msra.mxu0 0
    %2866 = vmatprep.subr.bf16.mxu0 0
    %2867 = vmatpush1.bf16.msra.mxu0 0
    %2868 = vmatprep.subr.bf16.mxu0 0
    %2869 = vmatpush1.bf16.msra.mxu0 0
    %2870 = vmatprep.mubr.bf16.mxu0 %v2793
    %2871 = vmatmul.mubr.bf16.gmra.mrb[0].mxu0 %v2587
    %v2872 = vpop.f32.mrb[0].mxu0
    %v2873 = vadd.f32 %v2833, %v2872
    %v2874 = vpop.f32.mrb[0].mxu0
    %v2875 = vpop.f32.mrb[0].mxu0
    %v2876 = vpop.f32.mrb[0].mxu0
    %2877 = vdwg.mxu0
    %2878 = vst [vmem:[#allocation10] sm:$0xff] %v2873
    // Predicated region
    $region62: #{tpu_custom_call.1} parent=1 // pred_check
      _
    $region63: #{tpu_custom_call.1} parent=1 // pred_check_branch
      %2880 = sbr.rel (0) target = $region65
    $region64: #{tpu_custom_call.1} parent=1 // pred_region
      %s2882 = ssub.s32 128, 128
      %2883 = vsyncadd [#allocation4], %s2882
      %s2885 = sshll.u32 [#allocation10], 4
      %s2886 = int_to_ptr.vmem [resolvable:$true] %s2885
      %2888 = dma.vmem_to_hbm [thread:$0]  %s2886, 128, %s11, [#allocation4]
    $region65: #{tpu_custom_call.1} parent=1 // pred_fallthru
      _
    // Predicated region
    $region66: #{tpu_custom_call.1} parent=1 // pred_check
      _
    $region67: #{tpu_custom_call.1} parent=1 // pred_check_branch
      %2890 = sbr.rel (0) target = $region69
    $region68: #{tpu_custom_call.1} parent=1 // pred_region
      %2891 = dma.done [#allocation4], 128
    $region69: #{tpu_custom_call.1} parent=1 // pred_fallthru
      _
    %2892 = vsyncpa [#allocation3], 1
    %2893 = vsyncpa [#allocation6], 1
    %2894 = vsyncpa [#allocation9], 1
    %2895 = vsyncpa [#allocation4], 1

</llo_original>
